<compile_context>
chip_gen: v7x
topology: tpu7x:2x2x1
jax: 0.10.0
libtpu: 0.0.40
codegen_flags: <defaults>
</compile_context>

<pallas_src>
import jax
import jax.numpy as jnp
from jax.experimental import pallas as pl
from jax.experimental.pallas import tpu as pltpu


def fused_gnn_kernel(x_ref, w_ref, adj_ref, ew_ref, o_ref, s_ref):
    """Fused multi-layer RiemannianGNN (euclidean manifold, eval mode).

    Grid: (num_gnn_layers + 1, num_row_tiles), both sequential ("arbitrary").
    Grid axis 0: step 0 is an init pass (copy masked x into the state);
    steps 1..L are the GNN layers.

    x_ref   : [TM, Dp]  pre-masked input rows for this tile (used at step 0)
    w_ref   : [Dp, Dp]  weight of the current GNN layer (layer dim squeezed)
    adj_ref : [TM, K]   neighbor indices for this row tile (int32)
    ew_ref  : [TM, K]   pre-masked edge weights for this row tile (float32)
    o_ref   : [Np, Dp]  output / resident state buffer (constant block index)
    s_ref   : [Np, Dp]  VMEM scratch: the other ping-pong state buffer
    """
    layer = pl.program_id(0)                 # 0 = init pass; 1..L = GNN layers
    tile = pl.program_id(1)
    num_gnn_layers = pl.num_programs(0) - 1

    tm, kmax = adj_ref.shape
    n_pad, d_pad = s_ref.shape
    n_chunks = n_pad // tm                   # node-axis chunks (static)

    row0 = pl.multiple_of(tile * tm, tm)

    def do_pass(read_ref, write_ref):
        # ---- init pass: copy the (pre-masked) input tile into the state ----
        @pl.when(layer == 0)
        def _():
            write_ref[pl.ds(row0, tm), :] = x_ref[...]

        # ---- GNN pass: combined = (scatter @ h_prev) @ W_l ; ReLU ----------
        @pl.when(layer > 0)
        def _():
            adj = adj_ref[...]
            ew = ew_ref[...]

            def chunk(c, acc):
                # scatter_chunk[i, n] = sum_k ew[i,k] * [adj[i,k] == c0 + n]
                if isinstance(c, int):
                    c0 = c * tm
                else:
                    c0 = pl.multiple_of(c * tm, tm)
                ids = jax.lax.broadcasted_iota(jnp.int32, (1, tm), 1) + c0
                scat = jnp.zeros((tm, tm), jnp.float32)
                for kk in range(kmax):           # K is small & static: unrolled
                    scat = scat + jnp.where(adj[:, kk:kk + 1] == ids,
                                            ew[:, kk:kk + 1], 0.0)
                h_chunk = read_ref[pl.ds(c0, tm), :]
                return acc + jnp.dot(scat, h_chunk,
                                     preferred_element_type=jnp.float32)

            gathered = jnp.zeros((tm, d_pad), jnp.float32)
            if n_chunks <= 8:                    # small graphs: static unroll
                for c in range(n_chunks):
                    gathered = chunk(c, gathered)
            else:
                gathered = jax.lax.fori_loop(0, n_chunks, chunk, gathered)

            combined = jnp.dot(gathered, w_ref[...],
                               preferred_element_type=jnp.float32)
            # dropout (eval) / exp_map_zero are identity; mask is implicit
            # (masked rows have zero edge weights -> zero rows -> relu -> 0).
            write_ref[pl.ds(row0, tm), :] = jnp.maximum(combined, 0.0).astype(
                write_ref.dtype)

    # Ping-pong parity chosen so the LAST GNN pass always writes o_ref.
    writes_out = ((num_gnn_layers - layer) % 2) == 0

    @pl.when(writes_out)
    def _():
        do_pass(s_ref, o_ref)

    @pl.when(jnp.logical_not(writes_out))
    def _():
        do_pass(o_ref, s_ref)


def _round_up(x, m):
    return ((x + m - 1) // m) * m


def riemannian_gnn_forward(node_repr, adj_list, edge_weight, mask, layer_weights,
                           *, max_rows_per_tile=512):
    """Euclidean RiemannianGNN forward (eval mode) via one fused Pallas call."""
    n, d = node_repr.shape
    k = adj_list.shape[1]
    num_layers = len(layer_weights)

    # Lane-dense embedding axis; row axis padded to a multiple of the row tile.
    d_pad = _round_up(d, 128)
    tm = min(_round_up(n, 8), max_rows_per_tile)
    n_pad = _round_up(n, tm)
    num_tiles = n_pad // tm

    f32 = jnp.float32
    mask_f = mask.astype(f32)                                   # [n, 1], 0/1
    # Fold the mask into the inputs (exact for a 0/1 mask): masked node rows
    # become zero and masked destination rows get zero edge weights, so every
    # in-kernel mask multiply of the reference is implied automatically.
    x = jnp.zeros((n_pad, d_pad), f32).at[:n, :d].set(
        node_repr.astype(f32) * mask_f)
    ws = jnp.zeros((num_layers, d_pad, d_pad), f32)
    for i, w in enumerate(layer_weights):
        ws = ws.at[i, :d, :d].set(w.astype(f32))
    adj = jnp.zeros((n_pad, k), jnp.int32).at[:n, :].set(adj_list.astype(jnp.int32))
    ew = jnp.zeros((n_pad, k), f32).at[:n, :].set(
        edge_weight.astype(f32) * mask_f)

    # VMEM budget: two resident [Np, Dp] state buffers (output + scratch),
    # double-buffered tiles, and the chunked scatter temporaries.
    est_bytes = 4 * (
        2 * n_pad * d_pad          # resident: output block + ping-pong scratch
        + 2 * tm * d_pad           # x tile, double-buffered
        + 2 * d_pad * d_pad        # W_l, double-buffered
        + 2 * 2 * tm * k           # adj + ew tiles, double-buffered
        + 3 * tm * tm              # scatter chunk + compare/where temporaries
        + 3 * tm * d_pad)          # gathered / combined / relu temporaries
    try:
        phys_vmem = pltpu.get_tpu_info().vmem_capacity_bytes
    except Exception:
        phys_vmem = 64 * 1024 * 1024          # conservative (v7x-sized) fallback
    vmem_limit = int(min(max(2 * est_bytes, 16 * 1024 * 1024),
                         int(phys_vmem * 0.85)))

    out = pl.pallas_call(
        fused_gnn_kernel,
        out_shape=jax.ShapeDtypeStruct((n_pad, d_pad), f32),
        grid=(num_layers + 1, num_tiles),
        in_specs=[
            # x: tiled, only needed during the init pass (block index pinned to
            # 0 afterwards so it is not re-fetched every step).
            pl.BlockSpec((tm, d_pad), lambda l, j: (jnp.where(l == 0, j, 0), 0)),
            # W_l: one [Dp, Dp] block per GNN layer (layer dim squeezed).
            pl.BlockSpec((None, d_pad, d_pad),
                         lambda l, j: (jnp.maximum(l - 1, 0), 0, 0)),
            pl.BlockSpec((tm, k), lambda l, j: (j, 0)),          # adj tile
            pl.BlockSpec((tm, k), lambda l, j: (j, 0)),          # ew tile
        ],
        # Constant-index output block: resident node state, one HBM writeback.
        out_specs=pl.BlockSpec((n_pad, d_pad), lambda l, j: (0, 0)),
        scratch_shapes=[
            pltpu.VMEM((n_pad, d_pad), f32),   # ping-pong state buffer
        ],
        # Layer axis is a carried recurrence; row tiles within a layer are
        # independent but share the resident state buffers, so both stay
        # sequential here (see v7x TODO above).
        compiler_params=pltpu.CompilerParams(
            dimension_semantics=("arbitrary", "arbitrary"),
            vmem_limit_bytes=vmem_limit,
        ),
    )(x, ws, adj, ew)
    return out[:n, :d]


def reference_forward(node_repr, adj_list, edge_weight, mask, layer_weights):
    """Pure-JAX reference mirroring the PyTorch forward (euclidean manifold)."""
    x = node_repr
    n, k = adj_list.shape
    for w in layer_weights:
        x = x * mask
        msg = (x @ w) * mask
        neighbors = jnp.take(msg, adj_list.reshape(-1), axis=0).reshape(n, k, -1)
        neighbors = edge_weight[:, :, None] * neighbors
        combined = jnp.sum(neighbors, axis=1)
        combined = combined * mask          # dropout (eval) * mask
        x = combined * mask                 # exp_map_zero identity * mask
        x = jnp.maximum(x, 0.0) * mask      # activation * mask
    return x


if __name__ == "__main__":
    # Small, deterministic problem sizes.
    num_nodes = 16
    embed_size = 32
    max_neighbor = 8
    gnn_layer_count = 2

    key = jax.random.PRNGKey(0)
    k_x, k_adj, k_w, k_p0, k_p1 = jax.random.split(key, 5)

    node_repr = jax.random.normal(k_x, (num_nodes, embed_size), dtype=jnp.float32)
    adj_list = jax.random.randint(
        k_adj, (num_nodes, max_neighbor), 0, num_nodes, dtype=jnp.int32)
    edge_weight = jax.random.uniform(
        k_w, (num_nodes, max_neighbor), dtype=jnp.float32)

    # Mask: last two nodes are padding.
    mask = jnp.ones((num_nodes, 1), dtype=jnp.float32)
    mask = mask.at[-2:, :].set(0.0)

    # msg_0_weight: one [embed_size, embed_size] matrix per layer (tie_weight=False).
    scale = 1.0 / jnp.sqrt(jnp.float32(embed_size))
    layer_weights = [
        jax.random.normal(k_p0, (embed_size, embed_size), dtype=jnp.float32) * scale,
        jax.random.normal(k_p1, (embed_size, embed_size), dtype=jnp.float32) * scale,
    ][:gnn_layer_count]

    out = riemannian_gnn_forward(node_repr, adj_list, edge_weight, mask, layer_weights)
    out = jax.block_until_ready(out)

    ref = reference_forward(node_repr, adj_list, edge_weight, mask, layer_weights)
    assert out.shape == (num_nodes, embed_size)
    assert jnp.allclose(out, ref, rtol=1e-4, atol=1e-4), "mismatch vs reference"

    print("KERNEL_OK")
</pallas_src>

<mosaic_0001>
module attributes {stable_mosaic.version = 11 : i64} {
  func.func @fused_gnn_kernel(%arg0: i32, %arg1: i32, %arg2: memref<16x128xf32, #tpu.memory_space<vmem>>, %arg3: memref<1x128x128xf32, #tpu.memory_space<vmem>>, %arg4: memref<16x8xi32, #tpu.memory_space<vmem>>, %arg5: memref<16x8xf32, #tpu.memory_space<vmem>>, %arg6: memref<16x128xf32, #tpu.memory_space<vmem>>, %arg7: memref<16x128xf32, #tpu.memory_space<vmem>>) attributes {dimension_semantics = [#tpu.dimension_semantics<arbitrary>, #tpu.dimension_semantics<arbitrary>], iteration_bounds = array<i64: 3, 1>, scalar_prefetch = 0 : i64, scratch_operands = 1 : i64, tpu.core_type = #tpu.core_type<tc>, window_params = [{transform_indices = @transform_0, window_bounds = array<i64: 16, 128>}, {transform_indices = @transform_1, window_bounds = array<i64: 1, 128, 128>}, {transform_indices = @transform_2, window_bounds = array<i64: 16, 8>}, {transform_indices = @transform_3, window_bounds = array<i64: 16, 8>}, {pipeline_mode = #tpu.pipeline_mode<synchronous>, transform_indices = @transform_4, window_bounds = array<i64: 16, 128>}]} {
    %c16_i32 = arith.constant 16 : i32
    %0 = arith.muli %arg1, %c16_i32 : i32
    %1 = tpu.assume_multiple %0, 16 : i32
    %c2_i32 = arith.constant 2 : i32
    %2 = arith.subi %c2_i32, %arg0 : i32
    %c2_i32_0 = arith.constant 2 : i32
    %c0_i32 = arith.constant 0 : i32
    %3 = arith.cmpi eq, %c2_i32_0, %c0_i32 : i32
    %c1_i32 = arith.constant 1 : i32
    %4 = arith.select %3, %c1_i32, %c2_i32_0 : i32
    %5 = arith.remsi %2, %4 : i32
    %c0_i32_1 = arith.constant 0 : i32
    %6 = arith.cmpi ne, %5, %c0_i32_1 : i32
    %c0_i32_2 = arith.constant 0 : i32
    %7 = arith.cmpi slt, %5, %c0_i32_2 : i32
    %c0_i32_3 = arith.constant 0 : i32
    %8 = arith.cmpi slt, %4, %c0_i32_3 : i32
    %9 = arith.xori %7, %8 : i1
    %10 = arith.andi %9, %6 : i1
    %11 = arith.addi %5, %4 : i32
    %12 = arith.select %10, %11, %5 : i32
    %c0_i32_4 = arith.constant 0 : i32
    %13 = arith.cmpi eq, %12, %c0_i32_4 : i32
    %14 = arith.extui %13 : i1 to i32
    %c0_i32_5 = arith.constant 0 : i32
    %15 = arith.cmpi ne, %14, %c0_i32_5 : i32
    scf.if %15 {
      %c0_i32_7 = arith.constant 0 : i32
      %19 = arith.cmpi eq, %arg0, %c0_i32_7 : i32
      %20 = arith.extui %19 : i1 to i32
      %c0_i32_8 = arith.constant 0 : i32
      %21 = arith.cmpi ne, %20, %c0_i32_8 : i32
      scf.if %21 {
        %c0 = arith.constant 0 : index
        %c0_11 = arith.constant 0 : index
        %25 = vector.load %arg2[%c0, %c0_11] : memref<16x128xf32, #tpu.memory_space<vmem>>, vector<16x128xf32>
        %26 = arith.index_cast %1 : i32 to index
        %c0_12 = arith.constant 0 : index
        %27 = vector.load %arg6[%26, %c0_12] : memref<16x128xf32, #tpu.memory_space<vmem>>, vector<16x128xf32>
        tpu.vector_store %arg6[%26, %c0_12], %25 {strides = array<i32>} : memref<16x128xf32, #tpu.memory_space<vmem>>, vector<16x128xf32>,
      } else {
      }
      %c0_i32_9 = arith.constant 0 : i32
      %22 = arith.cmpi sgt, %arg0, %c0_i32_9 : i32
      %23 = arith.extui %22 : i1 to i32
      %c0_i32_10 = arith.constant 0 : i32
      %24 = arith.cmpi ne, %23, %c0_i32_10 : i32
      scf.if %24 {
        %c0 = arith.constant 0 : index
        %c0_11 = arith.constant 0 : index
        %25 = vector.load %arg4[%c0, %c0_11] : memref<16x8xi32, #tpu.memory_space<vmem>>, vector<16x8xi32>
        %c0_12 = arith.constant 0 : index
        %c0_13 = arith.constant 0 : index
        %26 = vector.load %arg5[%c0_12, %c0_13] : memref<16x8xf32, #tpu.memory_space<vmem>>, vector<16x8xf32>
        %cst = arith.constant 0.000000e+00 : f32
        %27 = vector.broadcast %cst : f32 to vector<16x128xf32>
        %28 = tpu.iota {dimensions = array<i32: 1>} : vector<1x16xi32>
        %c0_i32_14 = arith.constant 0 : i32
        %29 = vector.broadcast %c0_i32_14 : i32 to vector<1x16xi32>
        %30 = arith.addi %28, %29 : vector<1x16xi32>
        %cst_15 = arith.constant 0.000000e+00 : f32
        %31 = vector.broadcast %cst_15 : f32 to vector<16x16xf32>
        %32 = vector.extract_strided_slice %25 {offsets = [0, 0], sizes = [16, 1], strides = [1, 1]} : vector<16x8xi32> to vector<16x1xi32>
        %33 = vector.broadcast %32 : vector<16x1xi32> to vector<16x16xi32>
        %34 = vector.broadcast %30 : vector<1x16xi32> to vector<16x16xi32>
        %35 = arith.cmpi eq, %33, %34 : vector<16x16xi32>
        %36 = vector.extract_strided_slice %26 {offsets = [0, 0], sizes = [16, 1], strides = [1, 1]} : vector<16x8xf32> to vector<16x1xf32>
        %cst_16 = arith.constant 0.000000e+00 : f32
        %37 = vector.shape_cast %36 : vector<16x1xf32> to vector<16x1xf32>
        %38 = vector.broadcast %37 : vector<16x1xf32> to vector<16x16xf32>
        %39 = vector.broadcast %cst_16 : f32 to vector<16x16xf32>
        %40 = arith.select %35, %38, %39 : vector<16x16xi1>, vector<16x16xf32>
        %41 = arith.addf %31, %40 : vector<16x16xf32>
        %42 = vector.extract_strided_slice %25 {offsets = [0, 1], sizes = [16, 1], strides = [1, 1]} : vector<16x8xi32> to vector<16x1xi32>
        %43 = vector.broadcast %42 : vector<16x1xi32> to vector<16x16xi32>
        %44 = vector.broadcast %30 : vector<1x16xi32> to vector<16x16xi32>
        %45 = arith.cmpi eq, %43, %44 : vector<16x16xi32>
        %46 = vector.extract_strided_slice %26 {offsets = [0, 1], sizes = [16, 1], strides = [1, 1]} : vector<16x8xf32> to vector<16x1xf32>
        %cst_17 = arith.constant 0.000000e+00 : f32
        %47 = vector.shape_cast %46 : vector<16x1xf32> to vector<16x1xf32>
        %48 = vector.broadcast %47 : vector<16x1xf32> to vector<16x16xf32>
        %49 = vector.broadcast %cst_17 : f32 to vector<16x16xf32>
        %50 = arith.select %45, %48, %49 : vector<16x16xi1>, vector<16x16xf32>
        %51 = arith.addf %41, %50 : vector<16x16xf32>
        %52 = vector.extract_strided_slice %25 {offsets = [0, 2], sizes = [16, 1], strides = [1, 1]} : vector<16x8xi32> to vector<16x1xi32>
        %53 = vector.broadcast %52 : vector<16x1xi32> to vector<16x16xi32>
        %54 = vector.broadcast %30 : vector<1x16xi32> to vector<16x16xi32>
        %55 = arith.cmpi eq, %53, %54 : vector<16x16xi32>
        %56 = vector.extract_strided_slice %26 {offsets = [0, 2], sizes = [16, 1], strides = [1, 1]} : vector<16x8xf32> to vector<16x1xf32>
        %cst_18 = arith.constant 0.000000e+00 : f32
        %57 = vector.shape_cast %56 : vector<16x1xf32> to vector<16x1xf32>
        %58 = vector.broadcast %57 : vector<16x1xf32> to vector<16x16xf32>
        %59 = vector.broadcast %cst_18 : f32 to vector<16x16xf32>
        %60 = arith.select %55, %58, %59 : vector<16x16xi1>, vector<16x16xf32>
        %61 = arith.addf %51, %60 : vector<16x16xf32>
        %62 = vector.extract_strided_slice %25 {offsets = [0, 3], sizes = [16, 1], strides = [1, 1]} : vector<16x8xi32> to vector<16x1xi32>
        %63 = vector.broadcast %62 : vector<16x1xi32> to vector<16x16xi32>
        %64 = vector.broadcast %30 : vector<1x16xi32> to vector<16x16xi32>
        %65 = arith.cmpi eq, %63, %64 : vector<16x16xi32>
        %66 = vector.extract_strided_slice %26 {offsets = [0, 3], sizes = [16, 1], strides = [1, 1]} : vector<16x8xf32> to vector<16x1xf32>
        %cst_19 = arith.constant 0.000000e+00 : f32
        %67 = vector.shape_cast %66 : vector<16x1xf32> to vector<16x1xf32>
        %68 = vector.broadcast %67 : vector<16x1xf32> to vector<16x16xf32>
        %69 = vector.broadcast %cst_19 : f32 to vector<16x16xf32>
        %70 = arith.select %65, %68, %69 : vector<16x16xi1>, vector<16x16xf32>
        %71 = arith.addf %61, %70 : vector<16x16xf32>
        %72 = vector.extract_strided_slice %25 {offsets = [0, 4], sizes = [16, 1], strides = [1, 1]} : vector<16x8xi32> to vector<16x1xi32>
        %73 = vector.broadcast %72 : vector<16x1xi32> to vector<16x16xi32>
        %74 = vector.broadcast %30 : vector<1x16xi32> to vector<16x16xi32>
        %75 = arith.cmpi eq, %73, %74 : vector<16x16xi32>
        %76 = vector.extract_strided_slice %26 {offsets = [0, 4], sizes = [16, 1], strides = [1, 1]} : vector<16x8xf32> to vector<16x1xf32>
        %cst_20 = arith.constant 0.000000e+00 : f32
        %77 = vector.shape_cast %76 : vector<16x1xf32> to vector<16x1xf32>
        %78 = vector.broadcast %77 : vector<16x1xf32> to vector<16x16xf32>
        %79 = vector.broadcast %cst_20 : f32 to vector<16x16xf32>
        %80 = arith.select %75, %78, %79 : vector<16x16xi1>, vector<16x16xf32>
        %81 = arith.addf %71, %80 : vector<16x16xf32>
        %82 = vector.extract_strided_slice %25 {offsets = [0, 5], sizes = [16, 1], strides = [1, 1]} : vector<16x8xi32> to vector<16x1xi32>
        %83 = vector.broadcast %82 : vector<16x1xi32> to vector<16x16xi32>
        %84 = vector.broadcast %30 : vector<1x16xi32> to vector<16x16xi32>
        %85 = arith.cmpi eq, %83, %84 : vector<16x16xi32>
        %86 = vector.extract_strided_slice %26 {offsets = [0, 5], sizes = [16, 1], strides = [1, 1]} : vector<16x8xf32> to vector<16x1xf32>
        %cst_21 = arith.constant 0.000000e+00 : f32
        %87 = vector.shape_cast %86 : vector<16x1xf32> to vector<16x1xf32>
        %88 = vector.broadcast %87 : vector<16x1xf32> to vector<16x16xf32>
        %89 = vector.broadcast %cst_21 : f32 to vector<16x16xf32>
        %90 = arith.select %85, %88, %89 : vector<16x16xi1>, vector<16x16xf32>
        %91 = arith.addf %81, %90 : vector<16x16xf32>
        %92 = vector.extract_strided_slice %25 {offsets = [0, 6], sizes = [16, 1], strides = [1, 1]} : vector<16x8xi32> to vector<16x1xi32>
        %93 = vector.broadcast %92 : vector<16x1xi32> to vector<16x16xi32>
        %94 = vector.broadcast %30 : vector<1x16xi32> to vector<16x16xi32>
        %95 = arith.cmpi eq, %93, %94 : vector<16x16xi32>
        %96 = vector.extract_strided_slice %26 {offsets = [0, 6], sizes = [16, 1], strides = [1, 1]} : vector<16x8xf32> to vector<16x1xf32>
        %cst_22 = arith.constant 0.000000e+00 : f32
        %97 = vector.shape_cast %96 : vector<16x1xf32> to vector<16x1xf32>
        %98 = vector.broadcast %97 : vector<16x1xf32> to vector<16x16xf32>
        %99 = vector.broadcast %cst_22 : f32 to vector<16x16xf32>
        %100 = arith.select %95, %98, %99 : vector<16x16xi1>, vector<16x16xf32>
        %101 = arith.addf %91, %100 : vector<16x16xf32>
        %102 = vector.extract_strided_slice %25 {offsets = [0, 7], sizes = [16, 1], strides = [1, 1]} : vector<16x8xi32> to vector<16x1xi32>
        %103 = vector.broadcast %102 : vector<16x1xi32> to vector<16x16xi32>
        %104 = vector.broadcast %30 : vector<1x16xi32> to vector<16x16xi32>
        %105 = arith.cmpi eq, %103, %104 : vector<16x16xi32>
        %106 = vector.extract_strided_slice %26 {offsets = [0, 7], sizes = [16, 1], strides = [1, 1]} : vector<16x8xf32> to vector<16x1xf32>
        %cst_23 = arith.constant 0.000000e+00 : f32
        %107 = vector.shape_cast %106 : vector<16x1xf32> to vector<16x1xf32>
        %108 = vector.broadcast %107 : vector<16x1xf32> to vector<16x16xf32>
        %109 = vector.broadcast %cst_23 : f32 to vector<16x16xf32>
        %110 = arith.select %105, %108, %109 : vector<16x16xi1>, vector<16x16xf32>
        %111 = arith.addf %101, %110 : vector<16x16xf32>
        %c0_24 = arith.constant 0 : index
        %c0_25 = arith.constant 0 : index
        %112 = vector.load %arg7[%c0_24, %c0_25] : memref<16x128xf32, #tpu.memory_space<vmem>>, vector<16x128xf32>
        %cst_26 = arith.constant dense<0.000000e+00> : vector<16x128xf32>
        %113 = tpu.matmul %111, %112, %cst_26 {dimension_numbers = #tpu.dot_dimension_numbers<[1], [0], [0], [1], [0, 0, 1, 1], [], []>} : vector<16x16xf32>, vector<16x128xf32>, vector<16x128xf32> -> vector<16x128xf32>
        %114 = arith.addf %27, %113 : vector<16x128xf32>
        %c0_27 = arith.constant 0 : index
        %c0_28 = arith.constant 0 : index
        %c0_29 = arith.constant 0 : index
        %115 = vector.load %arg3[%c0_27, %c0_28, %c0_29] : memref<1x128x128xf32, #tpu.memory_space<vmem>>, vector<1x128x128xf32>
        %116 = vector.shape_cast %115 : vector<1x128x128xf32> to vector<128x128xf32>
        %cst_30 = arith.constant dense<0.000000e+00> : vector<16x128xf32>
        %117 = tpu.matmul %114, %116, %cst_30 {dimension_numbers = #tpu.dot_dimension_numbers<[1], [0], [0], [1], [0, 0, 1, 1], [], []>} : vector<16x128xf32>, vector<128x128xf32>, vector<16x128xf32> -> vector<16x128xf32>
        %cst_31 = arith.constant 0.000000e+00 : f32
        %118 = vector.broadcast %cst_31 : f32 to vector<16x128xf32>
        %119 = arith.maximumf %117, %118 : vector<16x128xf32>
        %120 = arith.index_cast %1 : i32 to index
        %c0_32 = arith.constant 0 : index
        %121 = vector.load %arg6[%120, %c0_32] : memref<16x128xf32, #tpu.memory_space<vmem>>, vector<16x128xf32>
        tpu.vector_store %arg6[%120, %c0_32], %119 {strides = array<i32>} : memref<16x128xf32, #tpu.memory_space<vmem>>, vector<16x128xf32>,
      } else {
      }
    } else {
    }
    %true = arith.constant true
    %16 = arith.xori %13, %true : i1
    %17 = arith.extui %16 : i1 to i32
    %c0_i32_6 = arith.constant 0 : i32
    %18 = arith.cmpi ne, %17, %c0_i32_6 : i32
    scf.if %18 {
      %c0_i32_7 = arith.constant 0 : i32
      %19 = arith.cmpi eq, %arg0, %c0_i32_7 : i32
      %20 = arith.extui %19 : i1 to i32
      %c0_i32_8 = arith.constant 0 : i32
      %21 = arith.cmpi ne, %20, %c0_i32_8 : i32
      scf.if %21 {
        %c0 = arith.constant 0 : index
        %c0_11 = arith.constant 0 : index
        %25 = vector.load %arg2[%c0, %c0_11] : memref<16x128xf32, #tpu.memory_space<vmem>>, vector<16x128xf32>
        %26 = arith.index_cast %1 : i32 to index
        %c0_12 = arith.constant 0 : index
        %27 = vector.load %arg7[%26, %c0_12] : memref<16x128xf32, #tpu.memory_space<vmem>>, vector<16x128xf32>
        tpu.vector_store %arg7[%26, %c0_12], %25 {strides = array<i32>} : memref<16x128xf32, #tpu.memory_space<vmem>>, vector<16x128xf32>,
      } else {
      }
      %c0_i32_9 = arith.constant 0 : i32
      %22 = arith.cmpi sgt, %arg0, %c0_i32_9 : i32
      %23 = arith.extui %22 : i1 to i32
      %c0_i32_10 = arith.constant 0 : i32
      %24 = arith.cmpi ne, %23, %c0_i32_10 : i32
      scf.if %24 {
        %c0 = arith.constant 0 : index
        %c0_11 = arith.constant 0 : index
        %25 = vector.load %arg4[%c0, %c0_11] : memref<16x8xi32, #tpu.memory_space<vmem>>, vector<16x8xi32>
        %c0_12 = arith.constant 0 : index
        %c0_13 = arith.constant 0 : index
        %26 = vector.load %arg5[%c0_12, %c0_13] : memref<16x8xf32, #tpu.memory_space<vmem>>, vector<16x8xf32>
        %cst = arith.constant 0.000000e+00 : f32
        %27 = vector.broadcast %cst : f32 to vector<16x128xf32>
        %28 = tpu.iota {dimensions = array<i32: 1>} : vector<1x16xi32>
        %c0_i32_14 = arith.constant 0 : i32
        %29 = vector.broadcast %c0_i32_14 : i32 to vector<1x16xi32>
        %30 = arith.addi %28, %29 : vector<1x16xi32>
        %cst_15 = arith.constant 0.000000e+00 : f32
        %31 = vector.broadcast %cst_15 : f32 to vector<16x16xf32>
        %32 = vector.extract_strided_slice %25 {offsets = [0, 0], sizes = [16, 1], strides = [1, 1]} : vector<16x8xi32> to vector<16x1xi32>
        %33 = vector.broadcast %32 : vector<16x1xi32> to vector<16x16xi32>
        %34 = vector.broadcast %30 : vector<1x16xi32> to vector<16x16xi32>
        %35 = arith.cmpi eq, %33, %34 : vector<16x16xi32>
        %36 = vector.extract_strided_slice %26 {offsets = [0, 0], sizes = [16, 1], strides = [1, 1]} : vector<16x8xf32> to vector<16x1xf32>
        %cst_16 = arith.constant 0.000000e+00 : f32
        %37 = vector.shape_cast %36 : vector<16x1xf32> to vector<16x1xf32>
        %38 = vector.broadcast %37 : vector<16x1xf32> to vector<16x16xf32>
        %39 = vector.broadcast %cst_16 : f32 to vector<16x16xf32>
        %40 = arith.select %35, %38, %39 : vector<16x16xi1>, vector<16x16xf32>
        %41 = arith.addf %31, %40 : vector<16x16xf32>
        %42 = vector.extract_strided_slice %25 {offsets = [0, 1], sizes = [16, 1], strides = [1, 1]} : vector<16x8xi32> to vector<16x1xi32>
        %43 = vector.broadcast %42 : vector<16x1xi32> to vector<16x16xi32>
        %44 = vector.broadcast %30 : vector<1x16xi32> to vector<16x16xi32>
        %45 = arith.cmpi eq, %43, %44 : vector<16x16xi32>
        %46 = vector.extract_strided_slice %26 {offsets = [0, 1], sizes = [16, 1], strides = [1, 1]} : vector<16x8xf32> to vector<16x1xf32>
        %cst_17 = arith.constant 0.000000e+00 : f32
        %47 = vector.shape_cast %46 : vector<16x1xf32> to vector<16x1xf32>
        %48 = vector.broadcast %47 : vector<16x1xf32> to vector<16x16xf32>
        %49 = vector.broadcast %cst_17 : f32 to vector<16x16xf32>
        %50 = arith.select %45, %48, %49 : vector<16x16xi1>, vector<16x16xf32>
        %51 = arith.addf %41, %50 : vector<16x16xf32>
        %52 = vector.extract_strided_slice %25 {offsets = [0, 2], sizes = [16, 1], strides = [1, 1]} : vector<16x8xi32> to vector<16x1xi32>
        %53 = vector.broadcast %52 : vector<16x1xi32> to vector<16x16xi32>
        %54 = vector.broadcast %30 : vector<1x16xi32> to vector<16x16xi32>
        %55 = arith.cmpi eq, %53, %54 : vector<16x16xi32>
        %56 = vector.extract_strided_slice %26 {offsets = [0, 2], sizes = [16, 1], strides = [1, 1]} : vector<16x8xf32> to vector<16x1xf32>
        %cst_18 = arith.constant 0.000000e+00 : f32
        %57 = vector.shape_cast %56 : vector<16x1xf32> to vector<16x1xf32>
        %58 = vector.broadcast %57 : vector<16x1xf32> to vector<16x16xf32>
        %59 = vector.broadcast %cst_18 : f32 to vector<16x16xf32>
        %60 = arith.select %55, %58, %59 : vector<16x16xi1>, vector<16x16xf32>
        %61 = arith.addf %51, %60 : vector<16x16xf32>
        %62 = vector.extract_strided_slice %25 {offsets = [0, 3], sizes = [16, 1], strides = [1, 1]} : vector<16x8xi32> to vector<16x1xi32>
        %63 = vector.broadcast %62 : vector<16x1xi32> to vector<16x16xi32>
        %64 = vector.broadcast %30 : vector<1x16xi32> to vector<16x16xi32>
        %65 = arith.cmpi eq, %63, %64 : vector<16x16xi32>
        %66 = vector.extract_strided_slice %26 {offsets = [0, 3], sizes = [16, 1], strides = [1, 1]} : vector<16x8xf32> to vector<16x1xf32>
        %cst_19 = arith.constant 0.000000e+00 : f32
        %67 = vector.shape_cast %66 : vector<16x1xf32> to vector<16x1xf32>
        %68 = vector.broadcast %67 : vector<16x1xf32> to vector<16x16xf32>
        %69 = vector.broadcast %cst_19 : f32 to vector<16x16xf32>
        %70 = arith.select %65, %68, %69 : vector<16x16xi1>, vector<16x16xf32>
        %71 = arith.addf %61, %70 : vector<16x16xf32>
        %72 = vector.extract_strided_slice %25 {offsets = [0, 4], sizes = [16, 1], strides = [1, 1]} : vector<16x8xi32> to vector<16x1xi32>
        %73 = vector.broadcast %72 : vector<16x1xi32> to vector<16x16xi32>
        %74 = vector.broadcast %30 : vector<1x16xi32> to vector<16x16xi32>
        %75 = arith.cmpi eq, %73, %74 : vector<16x16xi32>
        %76 = vector.extract_strided_slice %26 {offsets = [0, 4], sizes = [16, 1], strides = [1, 1]} : vector<16x8xf32> to vector<16x1xf32>
        %cst_20 = arith.constant 0.000000e+00 : f32
        %77 = vector.shape_cast %76 : vector<16x1xf32> to vector<16x1xf32>
        %78 = vector.broadcast %77 : vector<16x1xf32> to vector<16x16xf32>
        %79 = vector.broadcast %cst_20 : f32 to vector<16x16xf32>
        %80 = arith.select %75, %78, %79 : vector<16x16xi1>, vector<16x16xf32>
        %81 = arith.addf %71, %80 : vector<16x16xf32>
        %82 = vector.extract_strided_slice %25 {offsets = [0, 5], sizes = [16, 1], strides = [1, 1]} : vector<16x8xi32> to vector<16x1xi32>
        %83 = vector.broadcast %82 : vector<16x1xi32> to vector<16x16xi32>
        %84 = vector.broadcast %30 : vector<1x16xi32> to vector<16x16xi32>
        %85 = arith.cmpi eq, %83, %84 : vector<16x16xi32>
        %86 = vector.extract_strided_slice %26 {offsets = [0, 5], sizes = [16, 1], strides = [1, 1]} : vector<16x8xf32> to vector<16x1xf32>
        %cst_21 = arith.constant 0.000000e+00 : f32
        %87 = vector.shape_cast %86 : vector<16x1xf32> to vector<16x1xf32>
        %88 = vector.broadcast %87 : vector<16x1xf32> to vector<16x16xf32>
        %89 = vector.broadcast %cst_21 : f32 to vector<16x16xf32>
        %90 = arith.select %85, %88, %89 : vector<16x16xi1>, vector<16x16xf32>
        %91 = arith.addf %81, %90 : vector<16x16xf32>
        %92 = vector.extract_strided_slice %25 {offsets = [0, 6], sizes = [16, 1], strides = [1, 1]} : vector<16x8xi32> to vector<16x1xi32>
        %93 = vector.broadcast %92 : vector<16x1xi32> to vector<16x16xi32>
        %94 = vector.broadcast %30 : vector<1x16xi32> to vector<16x16xi32>
        %95 = arith.cmpi eq, %93, %94 : vector<16x16xi32>
        %96 = vector.extract_strided_slice %26 {offsets = [0, 6], sizes = [16, 1], strides = [1, 1]} : vector<16x8xf32> to vector<16x1xf32>
        %cst_22 = arith.constant 0.000000e+00 : f32
        %97 = vector.shape_cast %96 : vector<16x1xf32> to vector<16x1xf32>
        %98 = vector.broadcast %97 : vector<16x1xf32> to vector<16x16xf32>
        %99 = vector.broadcast %cst_22 : f32 to vector<16x16xf32>
        %100 = arith.select %95, %98, %99 : vector<16x16xi1>, vector<16x16xf32>
        %101 = arith.addf %91, %100 : vector<16x16xf32>
        %102 = vector.extract_strided_slice %25 {offsets = [0, 7], sizes = [16, 1], strides = [1, 1]} : vector<16x8xi32> to vector<16x1xi32>
        %103 = vector.broadcast %102 : vector<16x1xi32> to vector<16x16xi32>
        %104 = vector.broadcast %30 : vector<1x16xi32> to vector<16x16xi32>
        %105 = arith.cmpi eq, %103, %104 : vector<16x16xi32>
        %106 = vector.extract_strided_slice %26 {offsets = [0, 7], sizes = [16, 1], strides = [1, 1]} : vector<16x8xf32> to vector<16x1xf32>
        %cst_23 = arith.constant 0.000000e+00 : f32
        %107 = vector.shape_cast %106 : vector<16x1xf32> to vector<16x1xf32>
        %108 = vector.broadcast %107 : vector<16x1xf32> to vector<16x16xf32>
        %109 = vector.broadcast %cst_23 : f32 to vector<16x16xf32>
        %110 = arith.select %105, %108, %109 : vector<16x16xi1>, vector<16x16xf32>
        %111 = arith.addf %101, %110 : vector<16x16xf32>
        %c0_24 = arith.constant 0 : index
        %c0_25 = arith.constant 0 : index
        %112 = vector.load %arg6[%c0_24, %c0_25] : memref<16x128xf32, #tpu.memory_space<vmem>>, vector<16x128xf32>
        %cst_26 = arith.constant dense<0.000000e+00> : vector<16x128xf32>
        %113 = tpu.matmul %111, %112, %cst_26 {dimension_numbers = #tpu.dot_dimension_numbers<[1], [0], [0], [1], [0, 0, 1, 1], [], []>} : vector<16x16xf32>, vector<16x128xf32>, vector<16x128xf32> -> vector<16x128xf32>
        %114 = arith.addf %27, %113 : vector<16x128xf32>
        %c0_27 = arith.constant 0 : index
        %c0_28 = arith.constant 0 : index
        %c0_29 = arith.constant 0 : index
        %115 = vector.load %arg3[%c0_27, %c0_28, %c0_29] : memref<1x128x128xf32, #tpu.memory_space<vmem>>, vector<1x128x128xf32>
        %116 = vector.shape_cast %115 : vector<1x128x128xf32> to vector<128x128xf32>
        %cst_30 = arith.constant dense<0.000000e+00> : vector<16x128xf32>
        %117 = tpu.matmul %114, %116, %cst_30 {dimension_numbers = #tpu.dot_dimension_numbers<[1], [0], [0], [1], [0, 0, 1, 1], [], []>} : vector<16x128xf32>, vector<128x128xf32>, vector<16x128xf32> -> vector<16x128xf32>
        %cst_31 = arith.constant 0.000000e+00 : f32
        %118 = vector.broadcast %cst_31 : f32 to vector<16x128xf32>
        %119 = arith.maximumf %117, %118 : vector<16x128xf32>
        %120 = arith.index_cast %1 : i32 to index
        %c0_32 = arith.constant 0 : index
        %121 = vector.load %arg7[%120, %c0_32] : memref<16x128xf32, #tpu.memory_space<vmem>>, vector<16x128xf32>
        tpu.vector_store %arg7[%120, %c0_32], %119 {strides = array<i32>} : memref<16x128xf32, #tpu.memory_space<vmem>>, vector<16x128xf32>,
      } else {
      }
    } else {
    }
    return
  }
  func.func @transform_0(%arg0: i32, %arg1: i32) -> (i32, i32) {
    %c0_i32 = arith.constant 0 : i32
    %0 = arith.cmpi eq, %arg0, %c0_i32 : i32
    %c0_i32_0 = arith.constant 0 : i32
    %1 = arith.select %0, %arg1, %c0_i32_0 : i32
    %c0_i32_1 = arith.constant 0 : i32
    %c0_i32_2 = arith.constant 0 : i32
    return %1, %c0_i32_1 : i32, i32
  }
  func.func @transform_1(%arg0: i32, %arg1: i32) -> (i32, i32, i32) {
    %c1_i32 = arith.constant 1 : i32
    %0 = arith.subi %arg0, %c1_i32 : i32
    %c0_i32 = arith.constant 0 : i32
    %1 = arith.maxsi %0, %c0_i32 : i32
    %c0_i32_0 = arith.constant 0 : i32
    %c0_i32_1 = arith.constant 0 : i32
    %c0_i32_2 = arith.constant 0 : i32
    return %1, %c0_i32_0, %c0_i32_1 : i32, i32, i32
  }
  func.func @transform_2(%arg0: i32, %arg1: i32) -> (i32, i32) {
    %c0_i32 = arith.constant 0 : i32
    %c0_i32_0 = arith.constant 0 : i32
    return %arg1, %c0_i32 : i32, i32
  }
  func.func @transform_3(%arg0: i32, %arg1: i32) -> (i32, i32) {
    %c0_i32 = arith.constant 0 : i32
    %c0_i32_0 = arith.constant 0 : i32
    return %arg1, %c0_i32 : i32, i32
  }
  func.func @transform_4(%arg0: i32, %arg1: i32) -> (i32, i32) {
    %c0_i32 = arith.constant 0 : i32
    %c0_i32_0 = arith.constant 0 : i32
    %c0_i32_1 = arith.constant 0 : i32
    return %c0_i32, %c0_i32_0 : i32, i32
  }
}

</mosaic_0001>

<llo_original>
// kernel: tpu_custom_call.1
$region0: #{tpu_custom_call.1}
  #allocation0 [shape = 'u32[]', space=smem, size = 0x4, offset = 0x4, fixed_abs, tag = 'smem constant byte address 0x4 - core index']
  #allocation1 [shape = 'u32[144,128]{1,0:T(1,128)}', space=vmem, size = 0x12000, scoped, tag = 'internal scratch']
  #allocation2 [shape = 'f32[16,128]{1,0:T(8,128)}', space=vmem, size = 0x2000, scoped, tag = 'scratch operand']
  %s0 = inlined_call_operand.vmem [shape: f32[16,128], index: 0, kind: input, shape index: {}]
  %s1 = inlined_call_operand.hbm [shape: f32[2,128,128], index: 1, kind: input, shape index: {}]
  %s2 = inlined_call_operand.vmem [shape: s32[16,8], index: 2, kind: input, shape index: {}]
  %s3 = inlined_call_operand.vmem [shape: f32[16,8], index: 3, kind: input, shape index: {}]
  %s4 = inlined_call_operand.hbm [shape: f32[16,128], index: 4, kind: output, shape index: {}]
  %s5 = sld [smem:[#allocation0]]
  $region77: #{tpu_custom_call.1} parent=0
    _
  %s7 = ssub.s32 1, %s5
  %s8 = scalar_select 0, %s7, %s5
  $region1: #{tpu_custom_call.1} parent=0
    #allocation3 [shape = 'u8[131072]{0}', space=vmem, size = 0x20000, scoped, tag = 'input window, operand 1']
    #allocation4 [shape = 's32[2]{0}', space=sflag, size = 0x8, scoped, tag = 'scoped memory for tpu_custom_call.1']
    #allocation5 [shape = 's32[2]{0}', space=sflag, size = 0x8, scoped, tag = 'scoped memory for tpu_custom_call.1']
    #allocation6 [shape = 'u8[8192]{0}', space=vmem, size = 0x2000, scoped, tag = 'output window, operand 0, single buffered']
    %9 = vsyncpa [#allocation4], 0
    %s10 = scalar_lea.sflag [#allocation4], 1
    %11 = vsyncpa %s10, 0
    %12 = vsyncpa [#allocation5], 0
    loop: start=0, step=1, limit=5
    $region2: #{tpu_custom_call.1} parent=1 // loop_pre_header
      _
    $region3: #{tpu_custom_call.1} parent=1 // loop_header
      %s14 = sphi 0, %s18
      %p15 = scmp.ge.s32.totalorder %s14, 5
      %s21 = sphi 0, %s33
      %s22 = sphi 0, %s29
      %s23 = sphi 0, %s21
      %s24 = sphi 0, %s22
      %s25 = sphi 0, %s23
      %s26 = sphi 0, %s24
      %s40 = sphi 0, %s42
      %s43 = sphi 0, %s40
      %s44 = sphi 0, %s43
      %s60 = sphi 0, %s44
      %s72 = sphi 0, %s74
      %s75 = sphi 0, %s72
      %s76 = sphi 0, %s75
      %s92 = sphi 0, %s76
      %s98 = sphi 0, %s100
      %s101 = sphi 0, %s98
      %s102 = sphi 0, %s101
      %s118 = sphi 0, %s102
      %s124 = sphi 0, %s126
      %s127 = sphi 0, %s124
      %s128 = sphi 0, %s127
      %s144 = sphi 0, %s128
      %s148 = sphi 0, %s148
      %s150 = sphi 0, %s148
      %s151 = sphi 0, %s150
      %s165 = sphi 0, %s151
    $region4: #{tpu_custom_call.1} parent=1 // loop_header_branch
      %17 = sbr.rel (%p15) target = $region8
    $region5: #{tpu_custom_call.1} parent=1 // loop_body
      %s19 = ssub.s32 %s14, 1
      %s20 = ssub.s32 %s14, 2
      %s27 = sadd.s32 1, %s22
      %p28 = scmp.ge.s32.totalorder %s27, 1
      %s29 = scalar_select %p28, 0, %s27
      %s30 = sadd.s32 1, %s21
      %s31 = scalar_select %p28, %s30, %s21
      %p32 = scmp.ge.s32.totalorder %s31, 3
      %s33 = scalar_select %p32, 0, %s31
      %p34 = scmp.eq.s32.totalorder %s21, 0
      %s35 = scalar_select %p34, %s22, 0
      %p36 = scmp.eq.s32.totalorder %s33, 0
      %s37 = scalar_select %p36, %s29, 0
      %s38 = ssub.s32 %s35, %s37
      %p39 = scmp.eq.s32.totalorder %s38, 0
      %s41 = sadd.s32 %s40, 1
      %s42 = scalar_select %p39, %s40, %s41
      %p45 = pneg %p39
      %p46 = scmp.eq.s32.totalorder %s14, 2
      %p47 = por %p45, %p46
      %p48 = scmp.ne.s32.totalorder %s40, %s43
      %p49 = scmp.eq.s32.totalorder %s14, 0
      %p50 = por %p48, %p49
      %p51 = scmp.ne.s32.totalorder %s40, %s43
      %p52 = scmp.eq.s32.totalorder %s19, 2
      %p53 = por %p51, %p52
      %p54 = scmp.ne.s32.totalorder %s43, %s44
      %p55 = scmp.eq.s32.totalorder %s19, 0
      %p56 = por %p54, %p55
      %p57 = scmp.ne.s32.totalorder %s43, %s44
      %p58 = scmp.eq.s32.totalorder %s20, 2
      %p59 = por %p57, %p58
      %p61 = scmp.ne.s32.totalorder %s44, %s60
      %p62 = scmp.eq.s32.totalorder %s20, 0
      %p63 = por %p61, %p62
      %s64 = ssub.s32 %s21, 1
      %p65 = scmp.gt.s32.totalorder %s64, 0
      %s66 = scalar_select %p65, %s64, 0
      %s67 = ssub.s32 %s33, 1
      %p68 = scmp.gt.s32.totalorder %s67, 0
      %s69 = scalar_select %p68, %s67, 0
      %s70 = ssub.s32 %s66, %s69
      %p71 = scmp.eq.s32.totalorder %s70, 0
      %s73 = sadd.s32 %s72, 1
      %s74 = scalar_select %p71, %s72, %s73
      %p77 = pneg %p71
      %p78 = scmp.eq.s32.totalorder %s14, 2
      %p79 = por %p77, %p78
      %p80 = scmp.ne.s32.totalorder %s72, %s75
      %p81 = scmp.eq.s32.totalorder %s14, 0
      %p82 = por %p80, %p81
      %p83 = scmp.ne.s32.totalorder %s72, %s75
      %p84 = scmp.eq.s32.totalorder %s19, 2
      %p85 = por %p83, %p84
      %p86 = scmp.ne.s32.totalorder %s75, %s76
      %p87 = scmp.eq.s32.totalorder %s19, 0
      %p88 = por %p86, %p87
      %p89 = scmp.ne.s32.totalorder %s75, %s76
      %p90 = scmp.eq.s32.totalorder %s20, 2
      %p91 = por %p89, %p90
      %p93 = scmp.ne.s32.totalorder %s76, %s92
      %p94 = scmp.eq.s32.totalorder %s20, 0
      %p95 = por %p93, %p94
      %s96 = ssub.s32 %s22, %s29
      %p97 = scmp.eq.s32.totalorder %s96, 0
      %s99 = sadd.s32 %s98, 1
      %s100 = scalar_select %p97, %s98, %s99
      %p103 = pneg %p97
      %p104 = scmp.eq.s32.totalorder %s14, 2
      %p105 = por %p103, %p104
      %p106 = scmp.ne.s32.totalorder %s98, %s101
      %p107 = scmp.eq.s32.totalorder %s14, 0
      %p108 = por %p106, %p107
      %p109 = scmp.ne.s32.totalorder %s98, %s101
      %p110 = scmp.eq.s32.totalorder %s19, 2
      %p111 = por %p109, %p110
      %p112 = scmp.ne.s32.totalorder %s101, %s102
      %p113 = scmp.eq.s32.totalorder %s19, 0
      %p114 = por %p112, %p113
      %p115 = scmp.ne.s32.totalorder %s101, %s102
      %p116 = scmp.eq.s32.totalorder %s20, 2
      %p117 = por %p115, %p116
      %p119 = scmp.ne.s32.totalorder %s102, %s118
      %p120 = scmp.eq.s32.totalorder %s20, 0
      %p121 = por %p119, %p120
      %s122 = ssub.s32 %s22, %s29
      %p123 = scmp.eq.s32.totalorder %s122, 0
      %s125 = sadd.s32 %s124, 1
      %s126 = scalar_select %p123, %s124, %s125
      %p129 = pneg %p123
      %p130 = scmp.eq.s32.totalorder %s14, 2
      %p131 = por %p129, %p130
      %p132 = scmp.ne.s32.totalorder %s124, %s127
      %p133 = scmp.eq.s32.totalorder %s14, 0
      %p134 = por %p132, %p133
      %p135 = scmp.ne.s32.totalorder %s124, %s127
      %p136 = scmp.eq.s32.totalorder %s19, 2
      %p137 = por %p135, %p136
      %p138 = scmp.ne.s32.totalorder %s127, %s128
      %p139 = scmp.eq.s32.totalorder %s19, 0
      %p140 = por %p138, %p139
      %p141 = scmp.ne.s32.totalorder %s127, %s128
      %p142 = scmp.eq.s32.totalorder %s20, 2
      %p143 = por %p141, %p142
      %p145 = scmp.ne.s32.totalorder %s128, %s144
      %p146 = scmp.eq.s32.totalorder %s20, 0
      %p147 = por %p145, %p146
      %s149 = sadd.s32 %s148, 1
      %p152 = scmp.eq.s32.totalorder %s14, 2
      %p153 = scmp.ne.s32.totalorder %s148, %s150
      %p154 = scmp.eq.s32.totalorder %s14, 0
      %p155 = por %p153, %p154
      %p156 = scmp.ne.s32.totalorder %s148, %s150
      %p157 = scmp.eq.s32.totalorder %s19, 2
      %p158 = por %p156, %p157
      %p159 = scmp.ne.s32.totalorder %s150, %s151
      %p160 = scmp.eq.s32.totalorder %s19, 0
      %p161 = por %p159, %p160
      %p162 = scmp.ne.s32.totalorder %s150, %s151
      %p163 = scmp.eq.s32.totalorder %s20, 2
      %p164 = por %p162, %p163
      %p166 = scmp.ne.s32.totalorder %s151, %s165
      %p167 = scmp.eq.s32.totalorder %s20, 0
      %p168 = por %p166, %p167
      %p169 = scmp.le.s32.totalorder 1, %s14
      %p170 = scmp.lt.s32.totalorder %s14, 4
      %p171 = pnand %p169, %p170
      %p172 = pneg %p171
      // Predicated region
      $region9: #{tpu_custom_call.1} parent=5 // pred_check
        _
      $region10: #{tpu_custom_call.1} parent=5 // pred_check_branch
        %174 = sbr.rel (%p171) target = $region12
      $region11: #{tpu_custom_call.1} parent=5 // pred_region
        %s175 = ssub.s32 %s14, 1
        // Predicated region
        $region13: #{tpu_custom_call.1} parent=11 // pred_check
          %p176 = pneg %p114
        $region14: #{tpu_custom_call.1} parent=11 // pred_check_branch
          %178 = sbr.rel (%p176) target = $region16
        $region15: #{tpu_custom_call.1} parent=11 // pred_region
          %s179 = smul.u32 2, %s24
          %p180 = scmp.lt.s32.totalorder %s179, 1
          %s181 = scalar_select %p180, %s179, 1
          %s182 = smul.addr %s181, 8
          %s183 = scalar_lea.vmem %s2, %s182
          %s184 = smul.u32 2, %s24
        $region16: #{tpu_custom_call.1} parent=11 // pred_fallthru
          _
        // Predicated region
        $region17: #{tpu_custom_call.1} parent=11 // pred_check
          %p185 = pneg %p140
        $region18: #{tpu_custom_call.1} parent=11 // pred_check_branch
          %187 = sbr.rel (%p185) target = $region20
        $region19: #{tpu_custom_call.1} parent=11 // pred_region
          %s188 = smul.u32 2, %s24
          %p189 = scmp.lt.s32.totalorder %s188, 1
          %s190 = scalar_select %p189, %s188, 1
          %s191 = smul.addr %s190, 8
          %s192 = scalar_lea.vmem %s3, %s191
          %s193 = smul.u32 2, %s24
        $region20: #{tpu_custom_call.1} parent=11 // pred_fallthru
          _
      $region12: #{tpu_custom_call.1} parent=5 // pred_fallthru
        _
      %p194 = scmp.lt.s32.totalorder %s14, 3
      // Predicated region
      $region21: #{tpu_custom_call.1} parent=5 // pred_check
        %p195 = pneg %p194
      $region22: #{tpu_custom_call.1} parent=5 // pred_check_branch
        %197 = sbr.rel (%p195) target = $region24
      $region23: #{tpu_custom_call.1} parent=5 // pred_region
        // Predicated region
        $region25: #{tpu_custom_call.1} parent=23 // pred_check
          %p198 = pneg %p50
        $region26: #{tpu_custom_call.1} parent=23 // pred_check_branch
          %200 = sbr.rel (%p198) target = $region28
        $region27: #{tpu_custom_call.1} parent=23 // pred_region
          %p201 = scmp.eq.s32.totalorder %s21, 0
          %s202 = scalar_select %p201, %s22, 0
          %s203 = smul.u32 2, %s202
          %p204 = scmp.lt.s32.totalorder %s203, 1
          %s205 = scalar_select %p204, %s203, 1
          %s206 = smul.addr %s205, 8
          %s207 = scalar_lea.vmem %s0, %s206
          %p208 = scmp.eq.s32.totalorder %s21, 0
          %s209 = scalar_select %p208, %s22, 0
          %s210 = smul.u32 2, %s209
        $region28: #{tpu_custom_call.1} parent=23 // pred_fallthru
          _
        // Predicated region
        $region29: #{tpu_custom_call.1} parent=23 // pred_check
          %p211 = pneg %p82
        $region30: #{tpu_custom_call.1} parent=23 // pred_check_branch
          %213 = sbr.rel (%p211) target = $region32
        $region31: #{tpu_custom_call.1} parent=23 // pred_region
          %s214 = sand.u32 %s72, 1
          %s215 = scalar_lea.sflag [#allocation4], %s214
          %s216 = sand.u32 %s72, 1
          %s217 = smul.addr %s216, 128
          %s218 = scalar_lea.vmem [#allocation3], %s217
          %s219 = ssub.s32 %s21, 1
          %p220 = scmp.gt.s32.totalorder %s219, 0
          %s221 = scalar_select %p220, %s219, 0
          %s223 = ssub.s32 2048, 2048
          %224 = vsyncadd %s215, %s223
          %s225 = smul.addr %s221, 16
          %s226 = smul.addr %s225, 128
          %s227 = scalar_lea.hbm %s1, %s226
          %s228 = sshll.u32 %s218, 4
          %s229 = int_to_ptr.vmem [resolvable:$true] %s228
          %234 = dma.hbm_to_vmem [thread:$0]  %s227, 2048, %s229, %s215, 128, 128, 8
        $region32: #{tpu_custom_call.1} parent=23 // pred_fallthru
          _
      $region24: #{tpu_custom_call.1} parent=5 // pred_fallthru
        _
      %p235 = scmp.le.s32.totalorder 1, %s14
      %p236 = scmp.lt.s32.totalorder %s14, 4
      %p237 = pnand %p235, %p236
      %p238 = pneg %p237
      // Predicated region
      $region33: #{tpu_custom_call.1} parent=5 // pred_check
        _
      $region34: #{tpu_custom_call.1} parent=5 // pred_check_branch
        %240 = sbr.rel (%p237) target = $region36
      $region35: #{tpu_custom_call.1} parent=5 // pred_region
        %s241 = ssub.s32 %s14, 1
        %s242 = sand.u32 %s75, 1
        %s243 = scalar_lea.sflag [#allocation4], %s242
        %s244 = sand.u32 %s75, 1
        %s245 = smul.addr %s244, 128
        %s246 = scalar_lea.vmem [#allocation3], %s245
        // Predicated region
        $region37: #{tpu_custom_call.1} parent=35 // pred_check
          %p247 = pneg %p88
        $region38: #{tpu_custom_call.1} parent=35 // pred_check_branch
          %249 = sbr.rel (%p247) target = $region40
        $region39: #{tpu_custom_call.1} parent=35 // pred_region
          %250 = dma.done %s243, 2048
        $region40: #{tpu_custom_call.1} parent=35 // pred_fallthru
          _
        %p251 = scmp.eq.s32.totalorder %s23, 0
        %s252 = scalar_select %p251, %s24, 0
        %s253 = smul.u32 2, %s252
        %p254 = scmp.lt.s32.totalorder %s253, 1
        %s255 = scalar_select %p254, %s253, 1
        %s256 = smul.addr %s255, 8
        %s257 = scalar_lea.vmem %s0, %s256
        %p258 = pneg %p56
        %p259 = pneg %p53
        %s260 = sand.u32 %s75, 1
        %s261 = scalar_lea.sflag [#allocation4], %s260
        %s262 = sand.u32 %s75, 1
        %s263 = smul.addr %s262, 128
        %s264 = scalar_lea.vmem [#allocation3], %s263
        %p265 = pneg %p88
        %p266 = pneg %p85
        %s267 = smul.u32 2, %s24
        %p268 = scmp.lt.s32.totalorder %s267, 1
        %s269 = scalar_select %p268, %s267, 1
        %s270 = smul.addr %s269, 8
        %s271 = scalar_lea.vmem %s2, %s270
        %p272 = pneg %p114
        %p273 = pneg %p111
        %s274 = smul.u32 2, %s24
        %p275 = scmp.lt.s32.totalorder %s274, 1
        %s276 = scalar_select %p275, %s274, 1
        %s277 = smul.addr %s276, 8
        %s278 = scalar_lea.vmem %s3, %s277
        %p279 = pneg %p140
        %p280 = pneg %p137
        %p281 = pneg %p161
        %p282 = pneg %p158
        %p283 = scmp.eq.s32.totalorder %s23, 0
        %s284 = scalar_select %p283, %s24, 0
        %s285 = smul.u32 2, %s284
        %p286 = scmp.lt.s32.totalorder %s285, 1
        %s287 = scalar_select %p286, %s285, 1
        %s288 = smul.addr %s287, 8
        %s289 = scalar_lea.vmem %s0, %s288
        %p290 = scmp.eq.s32.totalorder %s23, 0
        %s291 = scalar_select %p290, %s24, 0
        %s292 = smul.u32 2, %s291
        %s293 = ssub.s32 %s23, 1
        %p294 = scmp.gt.s32.totalorder %s293, 0
        %s295 = scalar_select %p294, %s293, 0
        %s296 = smul.u32 2, %s24
        %p297 = scmp.lt.s32.totalorder %s296, 1
        %s298 = scalar_select %p297, %s296, 1
        %s299 = smul.addr %s298, 8
        %s300 = scalar_lea.vmem %s2, %s299
        %s301 = smul.u32 2, %s24
        %s302 = smul.u32 2, %s24
        %p303 = scmp.lt.s32.totalorder %s302, 1
        %s304 = scalar_select %p303, %s302, 1
        %s305 = smul.addr %s304, 8
        %s306 = scalar_lea.vmem %s3, %s305
        %s307 = smul.u32 2, %s24
        %s308 = smul.u32 %s24, 16
        %s309 = ssub.s32 2, %s23
        %p310 = scmp.lt.s32.totalorder %s309, 0
        %s311 = ssub.s32 0, %s309
        %s312 = scalar_select %p310, %s311, %s309
        %s313 = sand.u32 %s312, 1
        %s314 = ssub.s32 0, %s313
        %s315 = scalar_select %p310, %s314, %s313
        %p316 = scmp.ne.s32.totalorder %s315, 0
        %p317 = scmp.lt.s32.totalorder %s315, 0
        %p318 = pnand %p317, %p316
        %p319 = pneg %p318
        %s320 = sadd.s32 %s315, 2
        %s321 = scalar_select %p319, %s320, %s315
        %p322 = scmp.eq.s32.totalorder %s321, 0
        // Predicated region
        $region41: #{tpu_custom_call.1} parent=35 // pred_check
          %p323 = pneg %p322
        $region42: #{tpu_custom_call.1} parent=35 // pred_check_branch
          %325 = sbr.rel (%p323) target = $region44
        $region43: #{tpu_custom_call.1} parent=35 // pred_region
          %p326 = scmp.eq.s32.totalorder %s23, 0
          // Predicated region
          $region45: #{tpu_custom_call.1} parent=43 // pred_check
            %p327 = pneg %p326
          $region46: #{tpu_custom_call.1} parent=43 // pred_check_branch
            %329 = sbr.rel (%p327) target = $region48
          $region47: #{tpu_custom_call.1} parent=43 // pred_region
            %v330 = vld [vmem:[%s289] sm:$0xff]
            %v331 = vld [vmem:[%s289 + $0x8] sm:$0xff]
            %s332 = scalar_lea.vmem [#allocation6], %s308
            %333 = vst [vmem:[%s332] sm:$0xff] %v330
            %334 = vst [vmem:[%s332 + $0x8] sm:$0xff] %v331
          $region48: #{tpu_custom_call.1} parent=43 // pred_fallthru
            _
          %p335 = scmp.gt.s32.totalorder %s23, 0
          // Predicated region
          $region49: #{tpu_custom_call.1} parent=43 // pred_check
            %p336 = pneg %p335
          $region50: #{tpu_custom_call.1} parent=43 // pred_check_branch
            %338 = sbr.rel (%p336) target = $region52
          $region51: #{tpu_custom_call.1} parent=43 // pred_region
            %v339 = vld [vmem:[%s300] sm:$0xff]
            %v340 = vld [vmem:[%s300 + $0x8] sm:$0xff]
            %v341 = vld [vmem:[%s306] sm:$0xff]
            %v342 = vld [vmem:[%s306 + $0x8] sm:$0xff]
            %v343 = vlaneseq
            %v344 = vand.u32 %v343, 127
            %345 = vset.pattern.permute.xlu0 0
            %346 = vperm.xlu0 %345, %v339
            %v347 = vpop.permute.xlu0 %346
            %348 = vset.pattern.permute.xlu0 0
            %349 = vperm.xlu0 %348, %v340
            %v350 = vpop.permute.xlu0 %349
            %vm351 = vcmp.eq.s32.totalorder %v347, %v344
            %vm352 = vcmp.eq.s32.totalorder %v350, %v344
            %354 = vset.pattern.permute.xlu0 0
            %355 = vperm.xlu0 %354, %v341
            %v356 = vpop.permute.xlu0 %355
            %359 = vset.pattern.permute.xlu0 0
            %360 = vperm.xlu0 %359, %v342
            %v361 = vpop.permute.xlu0 %360
            %v363 = vsel %vm351, %v356, 0.0
            %v364 = vsel %vm352, %v361, 0.0
            %v365 = vadd.f32 %v363, 0.0
            %v366 = vadd.f32 %v364, 0.0
            %367 = vset.pattern.permute.xlu0 1
            %368 = vperm.xlu0 %367, %v339
            %v369 = vpop.permute.xlu0 %368
            %370 = vset.pattern.permute.xlu0 1
            %371 = vperm.xlu0 %370, %v340
            %v372 = vpop.permute.xlu0 %371
            %vm373 = vcmp.eq.s32.totalorder %v369, %v344
            %vm374 = vcmp.eq.s32.totalorder %v372, %v344
            %375 = vset.pattern.permute.xlu0 1
            %376 = vperm.xlu0 %375, %v341
            %v377 = vpop.permute.xlu0 %376
            %379 = vset.pattern.permute.xlu0 1
            %380 = vperm.xlu0 %379, %v342
            %v381 = vpop.permute.xlu0 %380
            %v383 = vsel %vm373, %v377, 0.0
            %v384 = vsel %vm374, %v381, 0.0
            %v385 = vadd.f32 %v365, %v383
            %v386 = vadd.f32 %v366, %v384
            %387 = vset.pattern.permute.xlu0 2
            %388 = vperm.xlu0 %387, %v339
            %v389 = vpop.permute.xlu0 %388
            %390 = vset.pattern.permute.xlu0 2
            %391 = vperm.xlu0 %390, %v340
            %v392 = vpop.permute.xlu0 %391
            %vm393 = vcmp.eq.s32.totalorder %v389, %v344
            %vm394 = vcmp.eq.s32.totalorder %v392, %v344
            %395 = vset.pattern.permute.xlu0 2
            %396 = vperm.xlu0 %395, %v341
            %v397 = vpop.permute.xlu0 %396
            %399 = vset.pattern.permute.xlu0 2
            %400 = vperm.xlu0 %399, %v342
            %v401 = vpop.permute.xlu0 %400
            %v403 = vsel %vm393, %v397, 0.0
            %v404 = vsel %vm394, %v401, 0.0
            %v405 = vadd.f32 %v385, %v403
            %v406 = vadd.f32 %v386, %v404
            %407 = vset.pattern.permute.xlu0 3
            %408 = vperm.xlu0 %407, %v339
            %v409 = vpop.permute.xlu0 %408
            %410 = vset.pattern.permute.xlu0 3
            %411 = vperm.xlu0 %410, %v340
            %v412 = vpop.permute.xlu0 %411
            %vm413 = vcmp.eq.s32.totalorder %v409, %v344
            %vm414 = vcmp.eq.s32.totalorder %v412, %v344
            %415 = vset.pattern.permute.xlu0 3
            %416 = vperm.xlu0 %415, %v341
            %v417 = vpop.permute.xlu0 %416
            %419 = vset.pattern.permute.xlu0 3
            %420 = vperm.xlu0 %419, %v342
            %v421 = vpop.permute.xlu0 %420
            %v423 = vsel %vm413, %v417, 0.0
            %v424 = vsel %vm414, %v421, 0.0
            %v425 = vadd.f32 %v405, %v423
            %v426 = vadd.f32 %v406, %v424
            %427 = vset.pattern.permute.xlu0 4
            %428 = vperm.xlu0 %427, %v339
            %v429 = vpop.permute.xlu0 %428
            %430 = vset.pattern.permute.xlu0 4
            %431 = vperm.xlu0 %430, %v340
            %v432 = vpop.permute.xlu0 %431
            %vm433 = vcmp.eq.s32.totalorder %v429, %v344
            %vm434 = vcmp.eq.s32.totalorder %v432, %v344
            %435 = vset.pattern.permute.xlu0 4
            %436 = vperm.xlu0 %435, %v341
            %v437 = vpop.permute.xlu0 %436
            %439 = vset.pattern.permute.xlu0 4
            %440 = vperm.xlu0 %439, %v342
            %v441 = vpop.permute.xlu0 %440
            %v443 = vsel %vm433, %v437, 0.0
            %v444 = vsel %vm434, %v441, 0.0
            %v445 = vadd.f32 %v425, %v443
            %v446 = vadd.f32 %v426, %v444
            %447 = vset.pattern.permute.xlu0 5
            %448 = vperm.xlu0 %447, %v339
            %v449 = vpop.permute.xlu0 %448
            %450 = vset.pattern.permute.xlu0 5
            %451 = vperm.xlu0 %450, %v340
            %v452 = vpop.permute.xlu0 %451
            %vm453 = vcmp.eq.s32.totalorder %v449, %v344
            %vm454 = vcmp.eq.s32.totalorder %v452, %v344
            %455 = vset.pattern.permute.xlu0 5
            %456 = vperm.xlu0 %455, %v341
            %v457 = vpop.permute.xlu0 %456
            %459 = vset.pattern.permute.xlu0 5
            %460 = vperm.xlu0 %459, %v342
            %v461 = vpop.permute.xlu0 %460
            %v463 = vsel %vm453, %v457, 0.0
            %v464 = vsel %vm454, %v461, 0.0
            %v465 = vadd.f32 %v445, %v463
            %v466 = vadd.f32 %v446, %v464
            %467 = vset.pattern.permute.xlu0 6
            %468 = vperm.xlu0 %467, %v339
            %v469 = vpop.permute.xlu0 %468
            %470 = vset.pattern.permute.xlu0 6
            %471 = vperm.xlu0 %470, %v340
            %v472 = vpop.permute.xlu0 %471
            %vm473 = vcmp.eq.s32.totalorder %v469, %v344
            %vm474 = vcmp.eq.s32.totalorder %v472, %v344
            %475 = vset.pattern.permute.xlu0 6
            %476 = vperm.xlu0 %475, %v341
            %v477 = vpop.permute.xlu0 %476
            %479 = vset.pattern.permute.xlu0 6
            %480 = vperm.xlu0 %479, %v342
            %v481 = vpop.permute.xlu0 %480
            %v483 = vsel %vm473, %v477, 0.0
            %v484 = vsel %vm474, %v481, 0.0
            %v485 = vadd.f32 %v465, %v483
            %v486 = vadd.f32 %v466, %v484
            %487 = vset.pattern.permute.xlu0 7
            %488 = vperm.xlu0 %487, %v339
            %v489 = vpop.permute.xlu0 %488
            %490 = vset.pattern.permute.xlu0 7
            %491 = vperm.xlu0 %490, %v340
            %v492 = vpop.permute.xlu0 %491
            %vm493 = vcmp.eq.s32.totalorder %v489, %v344
            %vm494 = vcmp.eq.s32.totalorder %v492, %v344
            %495 = vset.pattern.permute.xlu0 7
            %496 = vperm.xlu0 %495, %v341
            %v497 = vpop.permute.xlu0 %496
            %499 = vset.pattern.permute.xlu0 7
            %500 = vperm.xlu0 %499, %v342
            %v501 = vpop.permute.xlu0 %500
            %v503 = vsel %vm493, %v497, 0.0
            %v504 = vsel %vm494, %v501, 0.0
            %v505 = vadd.f32 %v485, %v503
            %v506 = vadd.f32 %v486, %v504
            %v507 = vld [vmem:[#allocation2] sm:$0xff]
            %v508 = vld [vmem:[#allocation2 + $0x8] sm:$0xff]
            %vm509 = vcmask 130048
            %v511 = vsel %vm509, %v505, 0
            %v514 = vsel %vm509, %v506, 0
            %516 = vmatprep.subr.mxu0 0.0
            %517 = vmatpush1.msra.mxu0 %v507
            %518 = vmatprep.subr.mxu0 0.0
            %519 = vmatpush1.msra.mxu0 %v508
            %520 = vmatprep.subr.mxu0 0.0
            %521 = vmatpush1.msra.mxu0 0.0
            %522 = vmatprep.subr.mxu0 0.0
            %523 = vmatpush1.msra.mxu0 0.0
            %524 = vmatprep.subr.mxu0 0.0
            %525 = vmatpush1.msra.mxu0 0.0
            %526 = vmatprep.subr.mxu0 0.0
            %527 = vmatpush1.msra.mxu0 0.0
            %528 = vmatprep.subr.mxu0 0.0
            %529 = vmatpush1.msra.mxu0 0.0
            %530 = vmatprep.subr.mxu0 0.0
            %531 = vmatpush1.msra.mxu0 0.0
            %532 = vmatprep.subr.mxu0 0.0
            %533 = vmatpush1.msra.mxu0 0.0
            %534 = vmatprep.subr.mxu0 0.0
            %535 = vmatpush1.msra.mxu0 0.0
            %536 = vmatprep.subr.mxu0 0.0
            %537 = vmatpush1.msra.mxu0 0.0
            %538 = vmatprep.subr.mxu0 0.0
            %539 = vmatpush1.msra.mxu0 0.0
            %540 = vmatprep.subr.mxu0 0.0
            %541 = vmatpush1.msra.mxu0 0.0
            %542 = vmatprep.subr.mxu0 0.0
            %543 = vmatpush1.msra.mxu0 0.0
            %544 = vmatprep.subr.mxu0 0.0
            %545 = vmatpush1.msra.mxu0 0.0
            %546 = vmatprep.subr.mxu0 0.0
            %547 = vmatpush1.msra.mxu0 0.0
            %548 = vmatprep.subr.mxu0 0.0
            %549 = vmatpush1.msra.mxu0 0.0
            %550 = vmatprep.subr.mxu0 0.0
            %551 = vmatpush1.msra.mxu0 0.0
            %552 = vmatprep.subr.mxu0 0.0
            %553 = vmatpush1.msra.mxu0 0.0
            %554 = vmatprep.subr.mxu0 0.0
            %555 = vmatpush1.msra.mxu0 0.0
            %556 = vmatprep.subr.mxu0 0.0
            %557 = vmatpush1.msra.mxu0 0.0
            %558 = vmatprep.subr.mxu0 0.0
            %559 = vmatpush1.msra.mxu0 0.0
            %560 = vmatprep.subr.mxu0 0.0
            %561 = vmatpush1.msra.mxu0 0.0
            %562 = vmatprep.subr.mxu0 0.0
            %563 = vmatpush1.msra.mxu0 0.0
            %564 = vmatprep.subr.mxu0 0.0
            %565 = vmatpush1.msra.mxu0 0.0
            %566 = vmatprep.subr.mxu0 0.0
            %567 = vmatpush1.msra.mxu0 0.0
            %568 = vmatprep.subr.mxu0 0.0
            %569 = vmatpush1.msra.mxu0 0.0
            %570 = vmatprep.subr.mxu0 0.0
            %571 = vmatpush1.msra.mxu0 0.0
            %572 = vmatprep.subr.mxu0 0.0
            %573 = vmatpush1.msra.mxu0 0.0
            %574 = vmatprep.subr.mxu0 0.0
            %575 = vmatpush1.msra.mxu0 0.0
            %576 = vmatprep.subr.mxu0 0.0
            %577 = vmatpush1.msra.mxu0 0.0
            %578 = vmatprep.subr.mxu0 0.0
            %579 = vmatpush1.msra.mxu0 0.0
            %580 = vmatprep.mubr.f32.mxu0 0.0
            %581 = vmatmul.mubr.f32.gmra.mrb[0].mxu0 %v511
            %v582 = vpop.f32.mrb[0].mxu0
            %v583 = vadd.f32 0.0, %v582
            %v584 = vpop.f32.mrb[0].mxu0
            %585 = vmatprep.mubr.f32.mxu0 0.0
            %586 = vmatmul.mubr.f32.gmra.mrb[0].mxu0 %v514
            %v587 = vpop.f32.mrb[0].mxu0
            %v588 = vadd.f32 0.0, %v587
            %v589 = vpop.f32.mrb[0].mxu0
            %590 = vdwg.mxu0
            %v591 = vld [vmem:[%s246] sm:$0xff]
            %v592 = vld [vmem:[%s246 + $0x8] sm:$0xff]
            %v593 = vld [vmem:[%s246 + $0x10] sm:$0xff]
            %v594 = vld [vmem:[%s246 + $0x18] sm:$0xff]
            %v595 = vld [vmem:[%s246 + $0x20] sm:$0xff]
            %v596 = vld [vmem:[%s246 + $0x28] sm:$0xff]
            %v597 = vld [vmem:[%s246 + $0x30] sm:$0xff]
            %v598 = vld [vmem:[%s246 + $0x38] sm:$0xff]
            %v599 = vld [vmem:[%s246 + $0x40] sm:$0xff]
            %v600 = vld [vmem:[%s246 + $0x48] sm:$0xff]
            %v601 = vld [vmem:[%s246 + $0x50] sm:$0xff]
            %v602 = vld [vmem:[%s246 + $0x58] sm:$0xff]
            %v603 = vld [vmem:[%s246 + $0x60] sm:$0xff]
            %v604 = vld [vmem:[%s246 + $0x68] sm:$0xff]
            %v605 = vld [vmem:[%s246 + $0x70] sm:$0xff]
            %v606 = vld [vmem:[%s246 + $0x78] sm:$0xff]
            %607 = vmatprep.subr.mxu0 0.0
            %608 = vmatpush1.msra.mxu0 %v591
            %609 = vmatprep.subr.mxu0 0.0
            %610 = vmatpush1.msra.mxu0 %v592
            %611 = vmatprep.subr.mxu0 0.0
            %612 = vmatpush1.msra.mxu0 %v593
            %613 = vmatprep.subr.mxu0 0.0
            %614 = vmatpush1.msra.mxu0 %v594
            %615 = vmatprep.subr.mxu0 0.0
            %616 = vmatpush1.msra.mxu0 %v595
            %617 = vmatprep.subr.mxu0 0.0
            %618 = vmatpush1.msra.mxu0 %v596
            %619 = vmatprep.subr.mxu0 0.0
            %620 = vmatpush1.msra.mxu0 %v597
            %621 = vmatprep.subr.mxu0 0.0
            %622 = vmatpush1.msra.mxu0 %v598
            %623 = vmatprep.subr.mxu0 0.0
            %624 = vmatpush1.msra.mxu0 %v599
            %625 = vmatprep.subr.mxu0 0.0
            %626 = vmatpush1.msra.mxu0 %v600
            %627 = vmatprep.subr.mxu0 0.0
            %628 = vmatpush1.msra.mxu0 %v601
            %629 = vmatprep.subr.mxu0 0.0
            %630 = vmatpush1.msra.mxu0 %v602
            %631 = vmatprep.subr.mxu0 0.0
            %632 = vmatpush1.msra.mxu0 %v603
            %633 = vmatprep.subr.mxu0 0.0
            %634 = vmatpush1.msra.mxu0 %v604
            %635 = vmatprep.subr.mxu0 0.0
            %636 = vmatpush1.msra.mxu0 %v605
            %637 = vmatprep.subr.mxu0 0.0
            %638 = vmatpush1.msra.mxu0 %v606
            %639 = vmatprep.subr.mxu0 0.0
            %640 = vmatpush1.msra.mxu0 0.0
            %641 = vmatprep.subr.mxu0 0.0
            %642 = vmatpush1.msra.mxu0 0.0
            %643 = vmatprep.subr.mxu0 0.0
            %644 = vmatpush1.msra.mxu0 0.0
            %645 = vmatprep.subr.mxu0 0.0
            %646 = vmatpush1.msra.mxu0 0.0
            %647 = vmatprep.subr.mxu0 0.0
            %648 = vmatpush1.msra.mxu0 0.0
            %649 = vmatprep.subr.mxu0 0.0
            %650 = vmatpush1.msra.mxu0 0.0
            %651 = vmatprep.subr.mxu0 0.0
            %652 = vmatpush1.msra.mxu0 0.0
            %653 = vmatprep.subr.mxu0 0.0
            %654 = vmatpush1.msra.mxu0 0.0
            %655 = vmatprep.subr.mxu0 0.0
            %656 = vmatpush1.msra.mxu0 0.0
            %657 = vmatprep.subr.mxu0 0.0
            %658 = vmatpush1.msra.mxu0 0.0
            %659 = vmatprep.subr.mxu0 0.0
            %660 = vmatpush1.msra.mxu0 0.0
            %661 = vmatprep.subr.mxu0 0.0
            %662 = vmatpush1.msra.mxu0 0.0
            %663 = vmatprep.subr.mxu0 0.0
            %664 = vmatpush1.msra.mxu0 0.0
            %665 = vmatprep.subr.mxu0 0.0
            %666 = vmatpush1.msra.mxu0 0.0
            %667 = vmatprep.subr.mxu0 0.0
            %668 = vmatpush1.msra.mxu0 0.0
            %669 = vmatprep.subr.mxu0 0.0
            %670 = vmatpush1.msra.mxu0 0.0
            %671 = vmatprep.mubr.f32.mxu0 0.0
            %672 = vmatmul.mubr.f32.gmra.mrb[0].mxu0 %v583
            %v673 = vpop.f32.mrb[0].mxu0
            %v674 = vadd.f32 0.0, %v673
            %v675 = vpop.f32.mrb[0].mxu0
            %676 = vmatprep.mubr.f32.mxu0 0.0
            %677 = vmatmul.mubr.f32.gmra.mrb[0].mxu0 %v588
            %v678 = vpop.f32.mrb[0].mxu0
            %v679 = vadd.f32 0.0, %v678
            %v680 = vpop.f32.mrb[0].mxu0
            %681 = vdwg.mxu0
            %v682 = vmax.f32 %v674, 0.0
            %v683 = vmax.f32 %v679, 0.0
            %s684 = scalar_lea.vmem [#allocation6], %s308
            %685 = vst [vmem:[%s684] sm:$0xff] %v682
            %686 = vst [vmem:[%s684 + $0x8] sm:$0xff] %v683
          $region52: #{tpu_custom_call.1} parent=43 // pred_fallthru
            _
        $region44: #{tpu_custom_call.1} parent=35 // pred_fallthru
          _
        %p687 = scmp.ne.s32.totalorder %s321, 0
        // Predicated region
        $region53: #{tpu_custom_call.1} parent=35 // pred_check
          %p688 = pneg %p687
        $region54: #{tpu_custom_call.1} parent=35 // pred_check_branch
          %690 = sbr.rel (%p688) target = $region56
        $region55: #{tpu_custom_call.1} parent=35 // pred_region
          %p691 = scmp.eq.s32.totalorder %s23, 0
          // Predicated region
          $region57: #{tpu_custom_call.1} parent=55 // pred_check
            %p692 = pneg %p691
          $region58: #{tpu_custom_call.1} parent=55 // pred_check_branch
            %694 = sbr.rel (%p692) target = $region60
          $region59: #{tpu_custom_call.1} parent=55 // pred_region
            %v695 = vld [vmem:[%s289] sm:$0xff]
            %v696 = vld [vmem:[%s289 + $0x8] sm:$0xff]
            %s697 = scalar_lea.vmem [#allocation2], %s308
            %698 = vst [vmem:[%s697] sm:$0xff] %v695
            %699 = vst [vmem:[%s697 + $0x8] sm:$0xff] %v696
          $region60: #{tpu_custom_call.1} parent=55 // pred_fallthru
            _
          %p700 = scmp.gt.s32.totalorder %s23, 0
          // Predicated region
          $region61: #{tpu_custom_call.1} parent=55 // pred_check
            %p701 = pneg %p700
          $region62: #{tpu_custom_call.1} parent=55 // pred_check_branch
            %703 = sbr.rel (%p701) target = $region64
          $region63: #{tpu_custom_call.1} parent=55 // pred_region
            %v704 = vld [vmem:[%s300] sm:$0xff]
            %v705 = vld [vmem:[%s300 + $0x8] sm:$0xff]
            %v706 = vld [vmem:[%s306] sm:$0xff]
            %v707 = vld [vmem:[%s306 + $0x8] sm:$0xff]
            %v708 = vlaneseq
            %v709 = vand.u32 %v708, 127
            %710 = vset.pattern.permute.xlu0 0
            %711 = vperm.xlu0 %710, %v704
            %v712 = vpop.permute.xlu0 %711
            %713 = vset.pattern.permute.xlu0 0
            %714 = vperm.xlu0 %713, %v705
            %v715 = vpop.permute.xlu0 %714
            %vm716 = vcmp.eq.s32.totalorder %v712, %v709
            %vm717 = vcmp.eq.s32.totalorder %v715, %v709
            %719 = vset.pattern.permute.xlu0 0
            %720 = vperm.xlu0 %719, %v706
            %v721 = vpop.permute.xlu0 %720
            %724 = vset.pattern.permute.xlu0 0
            %725 = vperm.xlu0 %724, %v707
            %v726 = vpop.permute.xlu0 %725
            %v728 = vsel %vm716, %v721, 0.0
            %v729 = vsel %vm717, %v726, 0.0
            %v730 = vadd.f32 %v728, 0.0
            %v731 = vadd.f32 %v729, 0.0
            %732 = vset.pattern.permute.xlu0 1
            %733 = vperm.xlu0 %732, %v704
            %v734 = vpop.permute.xlu0 %733
            %735 = vset.pattern.permute.xlu0 1
            %736 = vperm.xlu0 %735, %v705
            %v737 = vpop.permute.xlu0 %736
            %vm738 = vcmp.eq.s32.totalorder %v734, %v709
            %vm739 = vcmp.eq.s32.totalorder %v737, %v709
            %740 = vset.pattern.permute.xlu0 1
            %741 = vperm.xlu0 %740, %v706
            %v742 = vpop.permute.xlu0 %741
            %744 = vset.pattern.permute.xlu0 1
            %745 = vperm.xlu0 %744, %v707
            %v746 = vpop.permute.xlu0 %745
            %v748 = vsel %vm738, %v742, 0.0
            %v749 = vsel %vm739, %v746, 0.0
            %v750 = vadd.f32 %v730, %v748
            %v751 = vadd.f32 %v731, %v749
            %752 = vset.pattern.permute.xlu0 2
            %753 = vperm.xlu0 %752, %v704
            %v754 = vpop.permute.xlu0 %753
            %755 = vset.pattern.permute.xlu0 2
            %756 = vperm.xlu0 %755, %v705
            %v757 = vpop.permute.xlu0 %756
            %vm758 = vcmp.eq.s32.totalorder %v754, %v709
            %vm759 = vcmp.eq.s32.totalorder %v757, %v709
            %760 = vset.pattern.permute.xlu0 2
            %761 = vperm.xlu0 %760, %v706
            %v762 = vpop.permute.xlu0 %761
            %764 = vset.pattern.permute.xlu0 2
            %765 = vperm.xlu0 %764, %v707
            %v766 = vpop.permute.xlu0 %765
            %v768 = vsel %vm758, %v762, 0.0
            %v769 = vsel %vm759, %v766, 0.0
            %v770 = vadd.f32 %v750, %v768
            %v771 = vadd.f32 %v751, %v769
            %772 = vset.pattern.permute.xlu0 3
            %773 = vperm.xlu0 %772, %v704
            %v774 = vpop.permute.xlu0 %773
            %775 = vset.pattern.permute.xlu0 3
            %776 = vperm.xlu0 %775, %v705
            %v777 = vpop.permute.xlu0 %776
            %vm778 = vcmp.eq.s32.totalorder %v774, %v709
            %vm779 = vcmp.eq.s32.totalorder %v777, %v709
            %780 = vset.pattern.permute.xlu0 3
            %781 = vperm.xlu0 %780, %v706
            %v782 = vpop.permute.xlu0 %781
            %784 = vset.pattern.permute.xlu0 3
            %785 = vperm.xlu0 %784, %v707
            %v786 = vpop.permute.xlu0 %785
            %v788 = vsel %vm778, %v782, 0.0
            %v789 = vsel %vm779, %v786, 0.0
            %v790 = vadd.f32 %v770, %v788
            %v791 = vadd.f32 %v771, %v789
            %792 = vset.pattern.permute.xlu0 4
            %793 = vperm.xlu0 %792, %v704
            %v794 = vpop.permute.xlu0 %793
            %795 = vset.pattern.permute.xlu0 4
            %796 = vperm.xlu0 %795, %v705
            %v797 = vpop.permute.xlu0 %796
            %vm798 = vcmp.eq.s32.totalorder %v794, %v709
            %vm799 = vcmp.eq.s32.totalorder %v797, %v709
            %800 = vset.pattern.permute.xlu0 4
            %801 = vperm.xlu0 %800, %v706
            %v802 = vpop.permute.xlu0 %801
            %804 = vset.pattern.permute.xlu0 4
            %805 = vperm.xlu0 %804, %v707
            %v806 = vpop.permute.xlu0 %805
            %v808 = vsel %vm798, %v802, 0.0
            %v809 = vsel %vm799, %v806, 0.0
            %v810 = vadd.f32 %v790, %v808
            %v811 = vadd.f32 %v791, %v809
            %812 = vset.pattern.permute.xlu0 5
            %813 = vperm.xlu0 %812, %v704
            %v814 = vpop.permute.xlu0 %813
            %815 = vset.pattern.permute.xlu0 5
            %816 = vperm.xlu0 %815, %v705
            %v817 = vpop.permute.xlu0 %816
            %vm818 = vcmp.eq.s32.totalorder %v814, %v709
            %vm819 = vcmp.eq.s32.totalorder %v817, %v709
            %820 = vset.pattern.permute.xlu0 5
            %821 = vperm.xlu0 %820, %v706
            %v822 = vpop.permute.xlu0 %821
            %824 = vset.pattern.permute.xlu0 5
            %825 = vperm.xlu0 %824, %v707
            %v826 = vpop.permute.xlu0 %825
            %v828 = vsel %vm818, %v822, 0.0
            %v829 = vsel %vm819, %v826, 0.0
            %v830 = vadd.f32 %v810, %v828
            %v831 = vadd.f32 %v811, %v829
            %832 = vset.pattern.permute.xlu0 6
            %833 = vperm.xlu0 %832, %v704
            %v834 = vpop.permute.xlu0 %833
            %835 = vset.pattern.permute.xlu0 6
            %836 = vperm.xlu0 %835, %v705
            %v837 = vpop.permute.xlu0 %836
            %vm838 = vcmp.eq.s32.totalorder %v834, %v709
            %vm839 = vcmp.eq.s32.totalorder %v837, %v709
            %840 = vset.pattern.permute.xlu0 6
            %841 = vperm.xlu0 %840, %v706
            %v842 = vpop.permute.xlu0 %841
            %844 = vset.pattern.permute.xlu0 6
            %845 = vperm.xlu0 %844, %v707
            %v846 = vpop.permute.xlu0 %845
            %v848 = vsel %vm838, %v842, 0.0
            %v849 = vsel %vm839, %v846, 0.0
            %v850 = vadd.f32 %v830, %v848
            %v851 = vadd.f32 %v831, %v849
            %852 = vset.pattern.permute.xlu0 7
            %853 = vperm.xlu0 %852, %v704
            %v854 = vpop.permute.xlu0 %853
            %855 = vset.pattern.permute.xlu0 7
            %856 = vperm.xlu0 %855, %v705
            %v857 = vpop.permute.xlu0 %856
            %vm858 = vcmp.eq.s32.totalorder %v854, %v709
            %vm859 = vcmp.eq.s32.totalorder %v857, %v709
            %860 = vset.pattern.permute.xlu0 7
            %861 = vperm.xlu0 %860, %v706
            %v862 = vpop.permute.xlu0 %861
            %864 = vset.pattern.permute.xlu0 7
            %865 = vperm.xlu0 %864, %v707
            %v866 = vpop.permute.xlu0 %865
            %v868 = vsel %vm858, %v862, 0.0
            %v869 = vsel %vm859, %v866, 0.0
            %v870 = vadd.f32 %v850, %v868
            %v871 = vadd.f32 %v851, %v869
            %v872 = vld [vmem:[#allocation6] sm:$0xff]
            %v873 = vld [vmem:[#allocation6 + $0x8] sm:$0xff]
            %vm874 = vcmask 130048
            %v876 = vsel %vm874, %v870, 0
            %v879 = vsel %vm874, %v871, 0
            %881 = vmatprep.subr.mxu0 0.0
            %882 = vmatpush1.msra.mxu0 %v872
            %883 = vmatprep.subr.mxu0 0.0
            %884 = vmatpush1.msra.mxu0 %v873
            %885 = vmatprep.subr.mxu0 0.0
            %886 = vmatpush1.msra.mxu0 0.0
            %887 = vmatprep.subr.mxu0 0.0
            %888 = vmatpush1.msra.mxu0 0.0
            %889 = vmatprep.subr.mxu0 0.0
            %890 = vmatpush1.msra.mxu0 0.0
            %891 = vmatprep.subr.mxu0 0.0
            %892 = vmatpush1.msra.mxu0 0.0
            %893 = vmatprep.subr.mxu0 0.0
            %894 = vmatpush1.msra.mxu0 0.0
            %895 = vmatprep.subr.mxu0 0.0
            %896 = vmatpush1.msra.mxu0 0.0
            %897 = vmatprep.subr.mxu0 0.0
            %898 = vmatpush1.msra.mxu0 0.0
            %899 = vmatprep.subr.mxu0 0.0
            %900 = vmatpush1.msra.mxu0 0.0
            %901 = vmatprep.subr.mxu0 0.0
            %902 = vmatpush1.msra.mxu0 0.0
            %903 = vmatprep.subr.mxu0 0.0
            %904 = vmatpush1.msra.mxu0 0.0
            %905 = vmatprep.subr.mxu0 0.0
            %906 = vmatpush1.msra.mxu0 0.0
            %907 = vmatprep.subr.mxu0 0.0
            %908 = vmatpush1.msra.mxu0 0.0
            %909 = vmatprep.subr.mxu0 0.0
            %910 = vmatpush1.msra.mxu0 0.0
            %911 = vmatprep.subr.mxu0 0.0
            %912 = vmatpush1.msra.mxu0 0.0
            %913 = vmatprep.subr.mxu0 0.0
            %914 = vmatpush1.msra.mxu0 0.0
            %915 = vmatprep.subr.mxu0 0.0
            %916 = vmatpush1.msra.mxu0 0.0
            %917 = vmatprep.subr.mxu0 0.0
            %918 = vmatpush1.msra.mxu0 0.0
            %919 = vmatprep.subr.mxu0 0.0
            %920 = vmatpush1.msra.mxu0 0.0
            %921 = vmatprep.subr.mxu0 0.0
            %922 = vmatpush1.msra.mxu0 0.0
            %923 = vmatprep.subr.mxu0 0.0
            %924 = vmatpush1.msra.mxu0 0.0
            %925 = vmatprep.subr.mxu0 0.0
            %926 = vmatpush1.msra.mxu0 0.0
            %927 = vmatprep.subr.mxu0 0.0
            %928 = vmatpush1.msra.mxu0 0.0
            %929 = vmatprep.subr.mxu0 0.0
            %930 = vmatpush1.msra.mxu0 0.0
            %931 = vmatprep.subr.mxu0 0.0
            %932 = vmatpush1.msra.mxu0 0.0
            %933 = vmatprep.subr.mxu0 0.0
            %934 = vmatpush1.msra.mxu0 0.0
            %935 = vmatprep.subr.mxu0 0.0
            %936 = vmatpush1.msra.mxu0 0.0
            %937 = vmatprep.subr.mxu0 0.0
            %938 = vmatpush1.msra.mxu0 0.0
            %939 = vmatprep.subr.mxu0 0.0
            %940 = vmatpush1.msra.mxu0 0.0
            %941 = vmatprep.subr.mxu0 0.0
            %942 = vmatpush1.msra.mxu0 0.0
            %943 = vmatprep.subr.mxu0 0.0
            %944 = vmatpush1.msra.mxu0 0.0
            %945 = vmatprep.mubr.f32.mxu0 0.0
            %946 = vmatmul.mubr.f32.gmra.mrb[0].mxu0 %v876
            %v947 = vpop.f32.mrb[0].mxu0
            %v948 = vadd.f32 0.0, %v947
            %v949 = vpop.f32.mrb[0].mxu0
            %950 = vmatprep.mubr.f32.mxu0 0.0
            %951 = vmatmul.mubr.f32.gmra.mrb[0].mxu0 %v879
            %v952 = vpop.f32.mrb[0].mxu0
            %v953 = vadd.f32 0.0, %v952
            %v954 = vpop.f32.mrb[0].mxu0
            %955 = vdwg.mxu0
            %v956 = vld [vmem:[%s246] sm:$0xff]
            %v957 = vld [vmem:[%s246 + $0x8] sm:$0xff]
            %v958 = vld [vmem:[%s246 + $0x10] sm:$0xff]
            %v959 = vld [vmem:[%s246 + $0x18] sm:$0xff]
            %v960 = vld [vmem:[%s246 + $0x20] sm:$0xff]
            %v961 = vld [vmem:[%s246 + $0x28] sm:$0xff]
            %v962 = vld [vmem:[%s246 + $0x30] sm:$0xff]
            %v963 = vld [vmem:[%s246 + $0x38] sm:$0xff]
            %v964 = vld [vmem:[%s246 + $0x40] sm:$0xff]
            %v965 = vld [vmem:[%s246 + $0x48] sm:$0xff]
            %v966 = vld [vmem:[%s246 + $0x50] sm:$0xff]
            %v967 = vld [vmem:[%s246 + $0x58] sm:$0xff]
            %v968 = vld [vmem:[%s246 + $0x60] sm:$0xff]
            %v969 = vld [vmem:[%s246 + $0x68] sm:$0xff]
            %v970 = vld [vmem:[%s246 + $0x70] sm:$0xff]
            %v971 = vld [vmem:[%s246 + $0x78] sm:$0xff]
            %972 = vmatprep.subr.mxu0 0.0
            %973 = vmatpush1.msra.mxu0 %v956
            %974 = vmatprep.subr.mxu0 0.0
            %975 = vmatpush1.msra.mxu0 %v957
            %976 = vmatprep.subr.mxu0 0.0
            %977 = vmatpush1.msra.mxu0 %v958
            %978 = vmatprep.subr.mxu0 0.0
            %979 = vmatpush1.msra.mxu0 %v959
            %980 = vmatprep.subr.mxu0 0.0
            %981 = vmatpush1.msra.mxu0 %v960
            %982 = vmatprep.subr.mxu0 0.0
            %983 = vmatpush1.msra.mxu0 %v961
            %984 = vmatprep.subr.mxu0 0.0
            %985 = vmatpush1.msra.mxu0 %v962
            %986 = vmatprep.subr.mxu0 0.0
            %987 = vmatpush1.msra.mxu0 %v963
            %988 = vmatprep.subr.mxu0 0.0
            %989 = vmatpush1.msra.mxu0 %v964
            %990 = vmatprep.subr.mxu0 0.0
            %991 = vmatpush1.msra.mxu0 %v965
            %992 = vmatprep.subr.mxu0 0.0
            %993 = vmatpush1.msra.mxu0 %v966
            %994 = vmatprep.subr.mxu0 0.0
            %995 = vmatpush1.msra.mxu0 %v967
            %996 = vmatprep.subr.mxu0 0.0
            %997 = vmatpush1.msra.mxu0 %v968
            %998 = vmatprep.subr.mxu0 0.0
            %999 = vmatpush1.msra.mxu0 %v969
            %1000 = vmatprep.subr.mxu0 0.0
            %1001 = vmatpush1.msra.mxu0 %v970
            %1002 = vmatprep.subr.mxu0 0.0
            %1003 = vmatpush1.msra.mxu0 %v971
            %1004 = vmatprep.subr.mxu0 0.0
            %1005 = vmatpush1.msra.mxu0 0.0
            %1006 = vmatprep.subr.mxu0 0.0
            %1007 = vmatpush1.msra.mxu0 0.0
            %1008 = vmatprep.subr.mxu0 0.0
            %1009 = vmatpush1.msra.mxu0 0.0
            %1010 = vmatprep.subr.mxu0 0.0
            %1011 = vmatpush1.msra.mxu0 0.0
            %1012 = vmatprep.subr.mxu0 0.0
            %1013 = vmatpush1.msra.mxu0 0.0
            %1014 = vmatprep.subr.mxu0 0.0
            %1015 = vmatpush1.msra.mxu0 0.0
            %1016 = vmatprep.subr.mxu0 0.0
            %1017 = vmatpush1.msra.mxu0 0.0
            %1018 = vmatprep.subr.mxu0 0.0
            %1019 = vmatpush1.msra.mxu0 0.0
            %1020 = vmatprep.subr.mxu0 0.0
            %1021 = vmatpush1.msra.mxu0 0.0
            %1022 = vmatprep.subr.mxu0 0.0
            %1023 = vmatpush1.msra.mxu0 0.0
            %1024 = vmatprep.subr.mxu0 0.0
            %1025 = vmatpush1.msra.mxu0 0.0
            %1026 = vmatprep.subr.mxu0 0.0
            %1027 = vmatpush1.msra.mxu0 0.0
            %1028 = vmatprep.subr.mxu0 0.0
            %1029 = vmatpush1.msra.mxu0 0.0
            %1030 = vmatprep.subr.mxu0 0.0
            %1031 = vmatpush1.msra.mxu0 0.0
            %1032 = vmatprep.subr.mxu0 0.0
            %1033 = vmatpush1.msra.mxu0 0.0
            %1034 = vmatprep.subr.mxu0 0.0
            %1035 = vmatpush1.msra.mxu0 0.0
            %1036 = vmatprep.mubr.f32.mxu0 0.0
            %1037 = vmatmul.mubr.f32.gmra.mrb[0].mxu0 %v948
            %v1038 = vpop.f32.mrb[0].mxu0
            %v1039 = vadd.f32 0.0, %v1038
            %v1040 = vpop.f32.mrb[0].mxu0
            %1041 = vmatprep.mubr.f32.mxu0 0.0
            %1042 = vmatmul.mubr.f32.gmra.mrb[0].mxu0 %v953
            %v1043 = vpop.f32.mrb[0].mxu0
            %v1044 = vadd.f32 0.0, %v1043
            %v1045 = vpop.f32.mrb[0].mxu0
            %1046 = vdwg.mxu0
            %v1047 = vmax.f32 %v1039, 0.0
            %v1048 = vmax.f32 %v1044, 0.0
            %s1049 = scalar_lea.vmem [#allocation2], %s308
            %1050 = vst [vmem:[%s1049] sm:$0xff] %v1047
            %1051 = vst [vmem:[%s1049 + $0x8] sm:$0xff] %v1048
          $region64: #{tpu_custom_call.1} parent=55 // pred_fallthru
            _
        $region56: #{tpu_custom_call.1} parent=35 // pred_fallthru
          _
        // Predicated region
        $region65: #{tpu_custom_call.1} parent=35 // pred_check
          %p1052 = pneg %p158
        $region66: #{tpu_custom_call.1} parent=35 // pred_check_branch
          %1054 = sbr.rel (%p1052) target = $region68
        $region67: #{tpu_custom_call.1} parent=35 // pred_region
          %s1056 = ssub.s32 256, 256
          %1057 = vsyncadd [#allocation5], %s1056
          %s1058 = sshll.u32 [#allocation6], 4
          %s1059 = int_to_ptr.vmem [resolvable:$true] %s1058
          %1064 = dma.vmem_to_hbm [thread:$0]  %s1059, 256, %s4, [#allocation5], 128, 128, 8
        $region68: #{tpu_custom_call.1} parent=35 // pred_fallthru
          _
        // Predicated region
        $region69: #{tpu_custom_call.1} parent=35 // pred_check
          %p1065 = pneg %p158
        $region70: #{tpu_custom_call.1} parent=35 // pred_check_branch
          %1067 = sbr.rel (%p1065) target = $region72
        $region71: #{tpu_custom_call.1} parent=35 // pred_region
          %1068 = dma.done [#allocation5], 256
        $region72: #{tpu_custom_call.1} parent=35 // pred_fallthru
          _
      $region36: #{tpu_custom_call.1} parent=5 // pred_fallthru
        _
      %p1069 = scmp.le.s32.totalorder 2, %s14
      // Predicated region
      $region73: #{tpu_custom_call.1} parent=5 // pred_check
        %p1070 = pneg %p1069
      $region74: #{tpu_custom_call.1} parent=5 // pred_check_branch
        %1072 = sbr.rel (%p1070) target = $region76
      $region75: #{tpu_custom_call.1} parent=5 // pred_region
        %s1073 = ssub.s32 %s14, 2
      $region76: #{tpu_custom_call.1} parent=5 // pred_fallthru
        _
    $region6: #{tpu_custom_call.1} parent=1 // loop_footer
      %s18 = sadd.s32 1, %s14
    $region7: #{tpu_custom_call.1} parent=1 // loop_footer_branch
      %13 = sbr.rel target = $region3
    $region8: #{tpu_custom_call.1} parent=1 // loop_exit
      _
    %1074 = vsyncpa [#allocation4], 1
    %s1075 = scalar_lea.sflag [#allocation4], 1
    %1076 = vsyncpa %s1075, 1
    %1077 = vsyncpa [#allocation5], 1
    %s1078 = scalar_lea.sflag [#allocation5], 1
    %1079 = vsyncpa %s1078, 1

</llo_original>
